<compile_context>
chip_gen: v7x
topology: tpu7x:2x2x1
jax: 0.10.0
libtpu: 0.0.40
codegen_flags: <defaults>
</compile_context>

<pallas_src>
import numpy as np
import jax
import jax.numpy as jnp
from jax.experimental import pallas as pl
from jax.experimental.pallas import tpu as pltpu

# ---- model hyper-parameters (small, lane-friendly) -------------------------
B, S, D = 2, 8, 128          # batch, sequence length, hidden size
H = 4                        # attention heads
HD = D // H                  # head dim
FF = 256                     # MLP intermediate size
NUM_LAYERS = 2
VOCAB = 100
CLIP_SKIP = -1
LN_EPS = 1e-5
SDVER = 1


def _layer_norm(x, gamma, beta):
    mu = jnp.mean(x, axis=-1, keepdims=True)
    var = jnp.mean((x - mu) ** 2, axis=-1, keepdims=True)
    return (x - mu) * jax.lax.rsqrt(var + LN_EPS) * gamma + beta


# ---------------------------------------------------------------------------
# Pallas kernel: ALL transformer layers + final LayerNorm, fused.
#   grid = (num_layers,)  -- sequential ("arbitrary"); activation lives in a
#   VMEM scratch; per-layer weights are streamed (double-buffered) per grid step.
# ---------------------------------------------------------------------------
def fused_encoder_kernel(x_ref, bias_ref,
                         ln1_g, ln1_b, wqkv, bqkv, wo, bo,
                         ln2_g, ln2_b, w1, b1, w2, b2,
                         fin_g, fin_b,
                         o_ref,
                         x_scr):
    layer = pl.program_id(0)

    @pl.when(layer == 0)
    def _():
        x_scr[...] = x_ref[...].astype(jnp.float32)

    x = x_scr[...]                                   # (B*S, D) f32 residual
    bs = x.shape[0]
    bias = bias_ref[...]                             # (B*S, B*S) additive mask

    # ---- self attention (pre-LN) ----
    h = _layer_norm(x, ln1_g[0], ln1_b[0]).astype(jnp.bfloat16)
    qkv = jnp.dot(h, wqkv[0], preferred_element_type=jnp.float32) + bqkv[0]
    qkv = qkv.astype(jnp.bfloat16)                   # (B*S, 3*D); q already scaled

    wo_m = wo[0]                                     # (D, D) bf16
    attn = jnp.zeros((bs, D), jnp.float32)
    for hh in range(H):                              # static, unrolled (H=4)
        qh = qkv[:, hh * HD:(hh + 1) * HD]
        kh = qkv[:, D + hh * HD:D + (hh + 1) * HD]
        vh = qkv[:, 2 * D + hh * HD:2 * D + (hh + 1) * HD]
        s = jnp.dot(qh, kh.T, preferred_element_type=jnp.float32) + bias
        s = s - jnp.max(s, axis=-1, keepdims=True)
        p = jnp.exp(s)
        p = p * pl.reciprocal(jnp.sum(p, axis=-1, keepdims=True), approx=True)
        ah = jnp.dot(p.astype(jnp.bfloat16), vh, preferred_element_type=jnp.float32)
        # fold this head straight into the output projection (keeps D=128 lanes dense)
        attn += jnp.dot(ah.astype(jnp.bfloat16), wo_m[hh * HD:(hh + 1) * HD, :],
                        preferred_element_type=jnp.float32)
    x = x + attn + bo[0]

    # ---- MLP (pre-LN, quick GELU) ----
    h2 = _layer_norm(x, ln2_g[0], ln2_b[0]).astype(jnp.bfloat16)
    f = jnp.dot(h2, w1[0], preferred_element_type=jnp.float32) + b1[0]
    f = f * jax.nn.sigmoid(1.702 * f)                # CLIP quick_gelu (f32)
    f = jnp.dot(f.astype(jnp.bfloat16), w2[0], preferred_element_type=jnp.float32) + b2[0]
    x = x + f

    x_scr[...] = x

    @pl.when(layer == pl.num_programs(0) - 1)
    def _():
        o_ref[...] = _layer_norm(x, fin_g[...], fin_b[...]).astype(o_ref.dtype)


def final_ln_kernel(x_ref, g_ref, b_ref, o_ref):
    # Only used when clip_skip selects the embedding hidden state (0 layers).
    x = x_ref[...].astype(jnp.float32)
    o_ref[...] = _layer_norm(x, g_ref[...], b_ref[...]).astype(o_ref.dtype)


# ---------------------------------------------------------------------------
# Wrappers around pallas_call
# ---------------------------------------------------------------------------
def _build_attn_bias(b, s):
    """Additive bias (0 / -1e9) enforcing per-batch-element causal attention on
    the flattened (B*S, B*S) score matrix.  Precomputed on host."""
    idx = np.arange(b * s)
    same_batch = (idx[:, None] // s) == (idx[None, :] // s)
    causal = (idx[None, :] % s) <= (idx[:, None] % s)
    return jnp.asarray(np.where(same_batch & causal, 0.0, -1e9), dtype=jnp.float32)


def run_fused_encoder(x2d, kp, n_layers):
    bs = x2d.shape[0]
    act_spec = pl.BlockSpec((bs, D), lambda l: (0, 0))
    bias_spec = pl.BlockSpec((bs, bs), lambda l: (0, 0))
    fln_spec = pl.BlockSpec((1, D), lambda l: (0, 0))

    def wspec(shape):
        # one layer's weights per grid step -> auto double-buffered layer pipeline
        return pl.BlockSpec((1,) + shape, lambda l: (l, 0, 0))

    in_specs = [
        act_spec, bias_spec,
        wspec((1, D)), wspec((1, D)),           # ln1 gamma/beta
        wspec((D, 3 * D)), wspec((1, 3 * D)),   # wqkv (q pre-scaled), bqkv
        wspec((D, D)), wspec((1, D)),           # wo, bo
        wspec((1, D)), wspec((1, D)),           # ln2 gamma/beta
        wspec((D, FF)), wspec((1, FF)),         # w1, b1
        wspec((FF, D)), wspec((1, D)),          # w2, b2
        fln_spec, fln_spec,                     # final LN gamma/beta
    ]
    sl = lambda a: a[:n_layers]
    bias = _build_attn_bias(bs // S, S)
    return pl.pallas_call(
        fused_encoder_kernel,
        out_shape=jax.ShapeDtypeStruct((bs, D), jnp.float32),
        grid=(n_layers,),
        in_specs=in_specs,
        out_specs=act_spec,
        scratch_shapes=[pltpu.VMEM((bs, D), jnp.float32)],
        compiler_params=pltpu.CompilerParams(dimension_semantics=("arbitrary",)),
    )(x2d, bias,
      sl(kp["ln1_g"]), sl(kp["ln1_b"]),
      sl(kp["wqkv"]), sl(kp["bqkv"]),
      sl(kp["wo"]), sl(kp["bo"]),
      sl(kp["ln2_g"]), sl(kp["ln2_b"]),
      sl(kp["w1"]), sl(kp["b1"]),
      sl(kp["w2"]), sl(kp["b2"]),
      kp["final_ln_g"], kp["final_ln_b"])


def run_final_ln(x2d, gamma, beta):
    bs = x2d.shape[0]
    return pl.pallas_call(
        final_ln_kernel,
        out_shape=jax.ShapeDtypeStruct((bs, D), jnp.float32),
        grid=(1,),
        in_specs=[pl.BlockSpec((bs, D), lambda l: (0, 0)),
                  pl.BlockSpec((1, D), lambda l: (0, 0)),
                  pl.BlockSpec((1, D), lambda l: (0, 0))],
        out_specs=pl.BlockSpec((bs, D), lambda l: (0, 0)),
    )(x2d, gamma, beta)


# ---------------------------------------------------------------------------
# Deterministic parameter init + kernel-side packing
# ---------------------------------------------------------------------------
def init_params(key):
    ks = iter(jax.random.split(key, 64))

    def n(shape, scale=0.02):
        return (scale * jax.random.normal(next(ks), shape)).astype(jnp.float32)

    params = {
        "tok_emb": n((VOCAB, D), scale=0.5),
        "pos_emb": n((S, D), scale=0.5),
        "final_ln_g": jnp.ones((1, D), jnp.float32),
        "final_ln_b": jnp.zeros((1, D), jnp.float32),
        "layers": [],
    }
    for _ in range(NUM_LAYERS):
        params["layers"].append({
            "ln1_g": jnp.ones((1, D), jnp.float32),
            "ln1_b": jnp.zeros((1, D), jnp.float32),
            "wq": n((D, D)), "bq": jnp.zeros((1, D), jnp.float32),
            "wk": n((D, D)), "bk": jnp.zeros((1, D), jnp.float32),
            "wv": n((D, D)), "bv": jnp.zeros((1, D), jnp.float32),
            "wo": n((D, D)), "bo": jnp.zeros((1, D), jnp.float32),
            "ln2_g": jnp.ones((1, D), jnp.float32),
            "ln2_b": jnp.zeros((1, D), jnp.float32),
            "w1": n((D, FF)), "b1": jnp.zeros((1, FF), jnp.float32),
            "w2": n((FF, D)), "b2": jnp.zeros((1, D), jnp.float32),
        })
    return params


def pack_kernel_params(params):
    """Stack per-layer weights along a leading layer axis; matmul weights in
    bf16 (MXU-native); fold the 1/sqrt(HD) attention scale into wq/bq."""
    scale = 1.0 / float(np.sqrt(HD))

    def stack(f):
        return jnp.stack([f(lp) for lp in params["layers"]], axis=0)

    return {
        "ln1_g": stack(lambda l: l["ln1_g"]),
        "ln1_b": stack(lambda l: l["ln1_b"]),
        "wqkv": stack(lambda l: jnp.concatenate(
            [l["wq"] * scale, l["wk"], l["wv"]], axis=1)).astype(jnp.bfloat16),
        "bqkv": stack(lambda l: jnp.concatenate(
            [l["bq"] * scale, l["bk"], l["bv"]], axis=1)),
        "wo": stack(lambda l: l["wo"]).astype(jnp.bfloat16),
        "bo": stack(lambda l: l["bo"]),
        "ln2_g": stack(lambda l: l["ln2_g"]),
        "ln2_b": stack(lambda l: l["ln2_b"]),
        "w1": stack(lambda l: l["w1"]).astype(jnp.bfloat16),
        "b1": stack(lambda l: l["b1"]),
        "w2": stack(lambda l: l["w2"]).astype(jnp.bfloat16),
        "b2": stack(lambda l: l["b2"]),
        "tok_emb": params["tok_emb"],
        "pos_emb": params["pos_emb"],
        "final_ln_g": params["final_ln_g"],
        "final_ln_b": params["final_ln_b"],
    }


class TextModelPallas:
    """JAX/Pallas equivalent of TextModel.forward for sdver < 2."""

    def __init__(self, params, sdver=SDVER, clip_skip=CLIP_SKIP):
        self.params = params
        self.kparams = pack_kernel_params(params)
        self.sdver = sdver
        self.clip_skip = clip_skip if clip_skip is not None else -1

    def forward(self, tokens):
        if 2 > self.sdver:
            return self.encode_sd1_2(tokens)
        # TODO(synk): sdxl / sd3 / flux paths require the second CLIP and T5
        # encoders (not instantiated in this synthetic single-encoder setup).
        raise NotImplementedError

    def encode_sd1_2(self, tokens):
        kp = self.kparams
        tok0 = tokens[0]                                    # (B, S) int32
        # Embedding lookup is glue (plain JAX).
        x = jnp.take(kp["tok_emb"], tok0, axis=0) + kp["pos_emb"][None, :, :]
        # hidden_states[clip_skip] == output after `n_layers` transformer layers
        n_hidden = NUM_LAYERS + 1
        n_layers = self.clip_skip if self.clip_skip >= 0 else n_hidden + self.clip_skip
        assert 0 <= n_layers <= NUM_LAYERS
        x2d = x.reshape(B * S, D)
        if n_layers == 0:
            h2d = run_final_ln(x2d, kp["final_ln_g"], kp["final_ln_b"])
        else:
            h2d = run_fused_encoder(x2d, kp, n_layers)
        return (h2d.reshape(B, S, D), None)


# ---------------------------------------------------------------------------
# Pure-JAX f32 reference (for a sanity check)
# ---------------------------------------------------------------------------
def reference_forward(params, tok0, clip_skip=CLIP_SKIP):
    x = jnp.take(params["tok_emb"], tok0, axis=0) + params["pos_emb"][None]
    hs = [x]
    causal = jnp.tril(jnp.ones((S, S), jnp.bool_))
    for lp in params["layers"]:
        h = _layer_norm(x, lp["ln1_g"], lp["ln1_b"])
        q = h @ lp["wq"] + lp["bq"]
        k = h @ lp["wk"] + lp["bk"]
        v = h @ lp["wv"] + lp["bv"]
        q = q.reshape(B, S, H, HD).transpose(0, 2, 1, 3) / np.sqrt(HD)
        k = k.reshape(B, S, H, HD).transpose(0, 2, 1, 3)
        v = v.reshape(B, S, H, HD).transpose(0, 2, 1, 3)
        s = jnp.einsum("bhqd,bhkd->bhqk", q, k)
        s = jnp.where(causal[None, None], s, -1e9)
        p_attn = jax.nn.softmax(s, axis=-1)
        a = jnp.einsum("bhqk,bhkd->bhqd", p_attn, v)
        a = a.transpose(0, 2, 1, 3).reshape(B, S, D)
        x = x + (a @ lp["wo"] + lp["bo"])
        h2 = _layer_norm(x, lp["ln2_g"], lp["ln2_b"])
        f = h2 @ lp["w1"] + lp["b1"]
        f = f * jax.nn.sigmoid(1.702 * f)
        x = x + (f @ lp["w2"] + lp["b2"])
        hs.append(x)
    h = hs[clip_skip]
    return _layer_norm(h, params["final_ln_g"], params["final_ln_b"])


if __name__ == "__main__":
    key = jax.random.PRNGKey(0)
    k_param, k_tok = jax.random.split(key)
    params = init_params(k_param)

    tokens0 = jax.random.randint(k_tok, (B, S), 0, VOCAB, dtype=jnp.int32)
    tokens = [tokens0, None, None]      # tokenizers[1], tokenizers[2] unused for sdver=1

    model = TextModelPallas(params, sdver=SDVER, clip_skip=CLIP_SKIP)
    encoder_hidden_states, pooled = model.forward(tokens)
    encoder_hidden_states = jax.block_until_ready(encoder_hidden_states)

    assert pooled is None
    assert encoder_hidden_states.shape == (B, S, D)

    ref = jax.block_until_ready(reference_forward(params, tokens0))
    # bf16 MXU inputs in the kernel vs. pure-f32 reference -> slightly looser tol.
    np.testing.assert_allclose(np.asarray(encoder_hidden_states),
                               np.asarray(ref), atol=5e-3, rtol=5e-3)

    print("KERNEL_OK")
</pallas_src>

<mosaic_0001>
module attributes {stable_mosaic.version = 11 : i64} {
  func.func @fused_encoder_kernel(%arg0: i32, %arg1: memref<16x128xf32, #tpu.memory_space<vmem>>, %arg2: memref<16x16xf32, #tpu.memory_space<vmem>>, %arg3: memref<1x1x128xf32, #tpu.memory_space<vmem>>, %arg4: memref<1x1x128xf32, #tpu.memory_space<vmem>>, %arg5: memref<1x128x384xbf16, #tpu.memory_space<vmem>>, %arg6: memref<1x1x384xf32, #tpu.memory_space<vmem>>, %arg7: memref<1x128x128xbf16, #tpu.memory_space<vmem>>, %arg8: memref<1x1x128xf32, #tpu.memory_space<vmem>>, %arg9: memref<1x1x128xf32, #tpu.memory_space<vmem>>, %arg10: memref<1x1x128xf32, #tpu.memory_space<vmem>>, %arg11: memref<1x128x256xbf16, #tpu.memory_space<vmem>>, %arg12: memref<1x1x256xf32, #tpu.memory_space<vmem>>, %arg13: memref<1x256x128xbf16, #tpu.memory_space<vmem>>, %arg14: memref<1x1x128xf32, #tpu.memory_space<vmem>>, %arg15: memref<1x128xf32, #tpu.memory_space<vmem>>, %arg16: memref<1x128xf32, #tpu.memory_space<vmem>>, %arg17: memref<16x128xf32, #tpu.memory_space<vmem>>, %arg18: memref<16x128xf32, #tpu.memory_space<vmem>>) attributes {dimension_semantics = [#tpu.dimension_semantics<arbitrary>], iteration_bounds = array<i64: 2>, scalar_prefetch = 0 : i64, scratch_operands = 1 : i64, tpu.core_type = #tpu.core_type<tc>, window_params = [{pipeline_mode = #tpu.pipeline_mode<synchronous>, transform_indices = @transform_0, window_bounds = array<i64: 16, 128>}, {pipeline_mode = #tpu.pipeline_mode<synchronous>, transform_indices = @transform_1, window_bounds = array<i64: 16, 16>}, {transform_indices = @transform_2, window_bounds = array<i64: 1, 1, 128>}, {transform_indices = @transform_3, window_bounds = array<i64: 1, 1, 128>}, {transform_indices = @transform_4, window_bounds = array<i64: 1, 128, 384>}, {transform_indices = @transform_5, window_bounds = array<i64: 1, 1, 384>}, {transform_indices = @transform_6, window_bounds = array<i64: 1, 128, 128>}, {transform_indices = @transform_7, window_bounds = array<i64: 1, 1, 128>}, {transform_indices = @transform_8, window_bounds = array<i64: 1, 1, 128>}, {transform_indices = @transform_9, window_bounds = array<i64: 1, 1, 128>}, {transform_indices = @transform_10, window_bounds = array<i64: 1, 128, 256>}, {transform_indices = @transform_11, window_bounds = array<i64: 1, 1, 256>}, {transform_indices = @transform_12, window_bounds = array<i64: 1, 256, 128>}, {transform_indices = @transform_13, window_bounds = array<i64: 1, 1, 128>}, {pipeline_mode = #tpu.pipeline_mode<synchronous>, transform_indices = @transform_14, window_bounds = array<i64: 1, 128>}, {pipeline_mode = #tpu.pipeline_mode<synchronous>, transform_indices = @transform_15, window_bounds = array<i64: 1, 128>}, {pipeline_mode = #tpu.pipeline_mode<synchronous>, transform_indices = @transform_16, window_bounds = array<i64: 16, 128>}]} {
    %c0_i32 = arith.constant 0 : i32
    %0 = arith.cmpi eq, %arg0, %c0_i32 : i32
    %1 = arith.extui %0 : i1 to i32
    %c0_i32_0 = arith.constant 0 : i32
    %2 = arith.cmpi ne, %1, %c0_i32_0 : i32
    scf.if %2 {
      %c0_78 = arith.constant 0 : index
      %c0_79 = arith.constant 0 : index
      %191 = vector.load %arg1[%c0_78, %c0_79] : memref<16x128xf32, #tpu.memory_space<vmem>>, vector<16x128xf32>
      %c0_80 = arith.constant 0 : index
      %c0_81 = arith.constant 0 : index
      %192 = vector.load %arg18[%c0_80, %c0_81] : memref<16x128xf32, #tpu.memory_space<vmem>>, vector<16x128xf32>
      tpu.vector_store %arg18[%c0_80, %c0_81], %191 {strides = array<i32>} : memref<16x128xf32, #tpu.memory_space<vmem>>, vector<16x128xf32>,
    } else {
    }
    %c0 = arith.constant 0 : index
    %c0_1 = arith.constant 0 : index
    %3 = vector.load %arg18[%c0, %c0_1] : memref<16x128xf32, #tpu.memory_space<vmem>>, vector<16x128xf32>
    %c0_2 = arith.constant 0 : index
    %c0_3 = arith.constant 0 : index
    %4 = vector.load %arg2[%c0_2, %c0_3] : memref<16x16xf32, #tpu.memory_space<vmem>>, vector<16x16xf32>
    %c0_4 = arith.constant 0 : index
    %c0_5 = arith.constant 0 : index
    %c0_6 = arith.constant 0 : index
    %5 = vector.load %arg3[%c0_4, %c0_5, %c0_6] : memref<1x1x128xf32, #tpu.memory_space<vmem>>, vector<1x1x128xf32>
    %6 = vector.shape_cast %5 : vector<1x1x128xf32> to vector<1x128xf32>
    %c0_7 = arith.constant 0 : index
    %c0_8 = arith.constant 0 : index
    %c0_9 = arith.constant 0 : index
    %7 = vector.load %arg4[%c0_7, %c0_8, %c0_9] : memref<1x1x128xf32, #tpu.memory_space<vmem>>, vector<1x1x128xf32>
    %8 = vector.shape_cast %7 : vector<1x1x128xf32> to vector<1x128xf32>
    %cst = arith.constant dense<0.000000e+00> : vector<16xf32>
    %9 = vector.multi_reduction <add>, %3, %cst [1] : vector<16x128xf32> to vector<16xf32>
    %10 = vector.shape_cast %9 : vector<16xf32> to vector<16x1xf32>
    %cst_10 = arith.constant 1.280000e+02 : f32
    %11 = vector.broadcast %cst_10 : f32 to vector<16x1xf32>
    %12 = arith.divf %10, %11 : vector<16x1xf32>
    %13 = vector.broadcast %12 : vector<16x1xf32> to vector<16x128xf32>
    %14 = arith.subf %3, %13 : vector<16x128xf32>
    %15 = arith.mulf %14, %14 : vector<16x128xf32>
    %cst_11 = arith.constant dense<0.000000e+00> : vector<16xf32>
    %16 = vector.multi_reduction <add>, %15, %cst_11 [1] : vector<16x128xf32> to vector<16xf32>
    %17 = vector.shape_cast %16 : vector<16xf32> to vector<16x1xf32>
    %cst_12 = arith.constant 1.280000e+02 : f32
    %18 = vector.broadcast %cst_12 : f32 to vector<16x1xf32>
    %19 = arith.divf %17, %18 : vector<16x1xf32>
    %20 = vector.broadcast %12 : vector<16x1xf32> to vector<16x128xf32>
    %21 = arith.subf %3, %20 : vector<16x128xf32>
    %cst_13 = arith.constant 9.99999974E-6 : f32
    %22 = vector.broadcast %cst_13 : f32 to vector<16x1xf32>
    %23 = arith.addf %19, %22 : vector<16x1xf32>
    %24 = math.rsqrt %23 : vector<16x1xf32>
    %25 = vector.broadcast %24 : vector<16x1xf32> to vector<16x128xf32>
    %26 = arith.mulf %21, %25 : vector<16x128xf32>
    %27 = vector.broadcast %6 : vector<1x128xf32> to vector<16x128xf32>
    %28 = arith.mulf %26, %27 : vector<16x128xf32>
    %29 = vector.broadcast %8 : vector<1x128xf32> to vector<16x128xf32>
    %30 = arith.addf %28, %29 : vector<16x128xf32>
    %31 = arith.truncf %30 : vector<16x128xf32> to vector<16x128xbf16>
    %c0_14 = arith.constant 0 : index
    %c0_15 = arith.constant 0 : index
    %c0_16 = arith.constant 0 : index
    %32 = vector.load %arg5[%c0_14, %c0_15, %c0_16] : memref<1x128x384xbf16, #tpu.memory_space<vmem>>, vector<1x128x384xbf16>
    %33 = vector.shape_cast %32 : vector<1x128x384xbf16> to vector<128x384xbf16>
    %cst_17 = arith.constant dense<0.000000e+00> : vector<16x384xf32>
    %34 = tpu.matmul %31, %33, %cst_17 {dimension_numbers = #tpu.dot_dimension_numbers<[1], [0], [0], [1], [0, 0, 1, 1], [], []>} : vector<16x128xbf16>, vector<128x384xbf16>, vector<16x384xf32> -> vector<16x384xf32>
    %c0_18 = arith.constant 0 : index
    %c0_19 = arith.constant 0 : index
    %c0_20 = arith.constant 0 : index
    %35 = vector.load %arg6[%c0_18, %c0_19, %c0_20] : memref<1x1x384xf32, #tpu.memory_space<vmem>>, vector<1x1x384xf32>
    %36 = vector.shape_cast %35 : vector<1x1x384xf32> to vector<1x384xf32>
    %37 = vector.broadcast %36 : vector<1x384xf32> to vector<16x384xf32>
    %38 = arith.addf %34, %37 : vector<16x384xf32>
    %39 = arith.truncf %38 : vector<16x384xf32> to vector<16x384xbf16>
    %c0_21 = arith.constant 0 : index
    %c0_22 = arith.constant 0 : index
    %c0_23 = arith.constant 0 : index
    %40 = vector.load %arg7[%c0_21, %c0_22, %c0_23] : memref<1x128x128xbf16, #tpu.memory_space<vmem>>, vector<1x128x128xbf16>
    %41 = vector.shape_cast %40 : vector<1x128x128xbf16> to vector<128x128xbf16>
    %cst_24 = arith.constant 0.000000e+00 : f32
    %42 = vector.broadcast %cst_24 : f32 to vector<16x128xf32>
    %43 = vector.extract_strided_slice %39 {offsets = [0, 0], sizes = [16, 32], strides = [1, 1]} : vector<16x384xbf16> to vector<16x32xbf16>
    %44 = vector.extract_strided_slice %39 {offsets = [0, 128], sizes = [16, 32], strides = [1, 1]} : vector<16x384xbf16> to vector<16x32xbf16>
    %45 = vector.extract_strided_slice %39 {offsets = [0, 256], sizes = [16, 32], strides = [1, 1]} : vector<16x384xbf16> to vector<16x32xbf16>
    %46 = tpu.transpose %44, [1, 0] : vector<16x32xbf16> -> vector<32x16xbf16>
    %cst_25 = arith.constant dense<0.000000e+00> : vector<16x16xf32>
    %47 = tpu.matmul %43, %46, %cst_25 {dimension_numbers = #tpu.dot_dimension_numbers<[1], [0], [0], [1], [0, 0, 1, 1], [], []>} : vector<16x32xbf16>, vector<32x16xbf16>, vector<16x16xf32> -> vector<16x16xf32>
    %48 = arith.addf %47, %4 : vector<16x16xf32>
    %cst_26 = arith.constant dense<0xFF800000> : vector<16xf32>
    %49 = vector.multi_reduction <maximumf>, %48, %cst_26 [1] : vector<16x16xf32> to vector<16xf32>
    %50 = vector.shape_cast %49 : vector<16xf32> to vector<16x1xf32>
    %51 = vector.broadcast %50 : vector<16x1xf32> to vector<16x16xf32>
    %52 = arith.subf %48, %51 : vector<16x16xf32>
    %53 = math.exp %52 : vector<16x16xf32>
    %cst_27 = arith.constant dense<0.000000e+00> : vector<16xf32>
    %54 = vector.multi_reduction <add>, %53, %cst_27 [1] : vector<16x16xf32> to vector<16xf32>
    %55 = vector.shape_cast %54 : vector<16xf32> to vector<16x1xf32>
    %56 = tpu.reciprocal %55 {approx = true} : vector<16x1xf32> -> vector<16x1xf32>
    %57 = vector.broadcast %56 : vector<16x1xf32> to vector<16x16xf32>
    %58 = arith.mulf %53, %57 : vector<16x16xf32>
    %59 = arith.truncf %58 : vector<16x16xf32> to vector<16x16xbf16>
    %cst_28 = arith.constant dense<0.000000e+00> : vector<16x32xf32>
    %60 = tpu.matmul %59, %45, %cst_28 {dimension_numbers = #tpu.dot_dimension_numbers<[1], [0], [0], [1], [0, 0, 1, 1], [], []>} : vector<16x16xbf16>, vector<16x32xbf16>, vector<16x32xf32> -> vector<16x32xf32>
    %61 = arith.truncf %60 : vector<16x32xf32> to vector<16x32xbf16>
    %62 = vector.extract_strided_slice %41 {offsets = [0, 0], sizes = [32, 128], strides = [1, 1]} : vector<128x128xbf16> to vector<32x128xbf16>
    %cst_29 = arith.constant dense<0.000000e+00> : vector<16x128xf32>
    %63 = tpu.matmul %61, %62, %cst_29 {dimension_numbers = #tpu.dot_dimension_numbers<[1], [0], [0], [1], [0, 0, 1, 1], [], []>} : vector<16x32xbf16>, vector<32x128xbf16>, vector<16x128xf32> -> vector<16x128xf32>
    %64 = arith.addf %42, %63 : vector<16x128xf32>
    %65 = vector.extract_strided_slice %39 {offsets = [0, 32], sizes = [16, 32], strides = [1, 1]} : vector<16x384xbf16> to vector<16x32xbf16>
    %66 = vector.extract_strided_slice %39 {offsets = [0, 160], sizes = [16, 32], strides = [1, 1]} : vector<16x384xbf16> to vector<16x32xbf16>
    %67 = vector.extract_strided_slice %39 {offsets = [0, 288], sizes = [16, 32], strides = [1, 1]} : vector<16x384xbf16> to vector<16x32xbf16>
    %68 = tpu.transpose %66, [1, 0] : vector<16x32xbf16> -> vector<32x16xbf16>
    %cst_30 = arith.constant dense<0.000000e+00> : vector<16x16xf32>
    %69 = tpu.matmul %65, %68, %cst_30 {dimension_numbers = #tpu.dot_dimension_numbers<[1], [0], [0], [1], [0, 0, 1, 1], [], []>} : vector<16x32xbf16>, vector<32x16xbf16>, vector<16x16xf32> -> vector<16x16xf32>
    %70 = arith.addf %69, %4 : vector<16x16xf32>
    %cst_31 = arith.constant dense<0xFF800000> : vector<16xf32>
    %71 = vector.multi_reduction <maximumf>, %70, %cst_31 [1] : vector<16x16xf32> to vector<16xf32>
    %72 = vector.shape_cast %71 : vector<16xf32> to vector<16x1xf32>
    %73 = vector.broadcast %72 : vector<16x1xf32> to vector<16x16xf32>
    %74 = arith.subf %70, %73 : vector<16x16xf32>
    %75 = math.exp %74 : vector<16x16xf32>
    %cst_32 = arith.constant dense<0.000000e+00> : vector<16xf32>
    %76 = vector.multi_reduction <add>, %75, %cst_32 [1] : vector<16x16xf32> to vector<16xf32>
    %77 = vector.shape_cast %76 : vector<16xf32> to vector<16x1xf32>
    %78 = tpu.reciprocal %77 {approx = true} : vector<16x1xf32> -> vector<16x1xf32>
    %79 = vector.broadcast %78 : vector<16x1xf32> to vector<16x16xf32>
    %80 = arith.mulf %75, %79 : vector<16x16xf32>
    %81 = arith.truncf %80 : vector<16x16xf32> to vector<16x16xbf16>
    %cst_33 = arith.constant dense<0.000000e+00> : vector<16x32xf32>
    %82 = tpu.matmul %81, %67, %cst_33 {dimension_numbers = #tpu.dot_dimension_numbers<[1], [0], [0], [1], [0, 0, 1, 1], [], []>} : vector<16x16xbf16>, vector<16x32xbf16>, vector<16x32xf32> -> vector<16x32xf32>
    %83 = arith.truncf %82 : vector<16x32xf32> to vector<16x32xbf16>
    %84 = vector.extract_strided_slice %41 {offsets = [32, 0], sizes = [32, 128], strides = [1, 1]} : vector<128x128xbf16> to vector<32x128xbf16>
    %cst_34 = arith.constant dense<0.000000e+00> : vector<16x128xf32>
    %85 = tpu.matmul %83, %84, %cst_34 {dimension_numbers = #tpu.dot_dimension_numbers<[1], [0], [0], [1], [0, 0, 1, 1], [], []>} : vector<16x32xbf16>, vector<32x128xbf16>, vector<16x128xf32> -> vector<16x128xf32>
    %86 = arith.addf %64, %85 : vector<16x128xf32>
    %87 = vector.extract_strided_slice %39 {offsets = [0, 64], sizes = [16, 32], strides = [1, 1]} : vector<16x384xbf16> to vector<16x32xbf16>
    %88 = vector.extract_strided_slice %39 {offsets = [0, 192], sizes = [16, 32], strides = [1, 1]} : vector<16x384xbf16> to vector<16x32xbf16>
    %89 = vector.extract_strided_slice %39 {offsets = [0, 320], sizes = [16, 32], strides = [1, 1]} : vector<16x384xbf16> to vector<16x32xbf16>
    %90 = tpu.transpose %88, [1, 0] : vector<16x32xbf16> -> vector<32x16xbf16>
    %cst_35 = arith.constant dense<0.000000e+00> : vector<16x16xf32>
    %91 = tpu.matmul %87, %90, %cst_35 {dimension_numbers = #tpu.dot_dimension_numbers<[1], [0], [0], [1], [0, 0, 1, 1], [], []>} : vector<16x32xbf16>, vector<32x16xbf16>, vector<16x16xf32> -> vector<16x16xf32>
    %92 = arith.addf %91, %4 : vector<16x16xf32>
    %cst_36 = arith.constant dense<0xFF800000> : vector<16xf32>
    %93 = vector.multi_reduction <maximumf>, %92, %cst_36 [1] : vector<16x16xf32> to vector<16xf32>
    %94 = vector.shape_cast %93 : vector<16xf32> to vector<16x1xf32>
    %95 = vector.broadcast %94 : vector<16x1xf32> to vector<16x16xf32>
    %96 = arith.subf %92, %95 : vector<16x16xf32>
    %97 = math.exp %96 : vector<16x16xf32>
    %cst_37 = arith.constant dense<0.000000e+00> : vector<16xf32>
    %98 = vector.multi_reduction <add>, %97, %cst_37 [1] : vector<16x16xf32> to vector<16xf32>
    %99 = vector.shape_cast %98 : vector<16xf32> to vector<16x1xf32>
    %100 = tpu.reciprocal %99 {approx = true} : vector<16x1xf32> -> vector<16x1xf32>
    %101 = vector.broadcast %100 : vector<16x1xf32> to vector<16x16xf32>
    %102 = arith.mulf %97, %101 : vector<16x16xf32>
    %103 = arith.truncf %102 : vector<16x16xf32> to vector<16x16xbf16>
    %cst_38 = arith.constant dense<0.000000e+00> : vector<16x32xf32>
    %104 = tpu.matmul %103, %89, %cst_38 {dimension_numbers = #tpu.dot_dimension_numbers<[1], [0], [0], [1], [0, 0, 1, 1], [], []>} : vector<16x16xbf16>, vector<16x32xbf16>, vector<16x32xf32> -> vector<16x32xf32>
    %105 = arith.truncf %104 : vector<16x32xf32> to vector<16x32xbf16>
    %106 = vector.extract_strided_slice %41 {offsets = [64, 0], sizes = [32, 128], strides = [1, 1]} : vector<128x128xbf16> to vector<32x128xbf16>
    %cst_39 = arith.constant dense<0.000000e+00> : vector<16x128xf32>
    %107 = tpu.matmul %105, %106, %cst_39 {dimension_numbers = #tpu.dot_dimension_numbers<[1], [0], [0], [1], [0, 0, 1, 1], [], []>} : vector<16x32xbf16>, vector<32x128xbf16>, vector<16x128xf32> -> vector<16x128xf32>
    %108 = arith.addf %86, %107 : vector<16x128xf32>
    %109 = vector.extract_strided_slice %39 {offsets = [0, 96], sizes = [16, 32], strides = [1, 1]} : vector<16x384xbf16> to vector<16x32xbf16>
    %110 = vector.extract_strided_slice %39 {offsets = [0, 224], sizes = [16, 32], strides = [1, 1]} : vector<16x384xbf16> to vector<16x32xbf16>
    %111 = vector.extract_strided_slice %39 {offsets = [0, 352], sizes = [16, 32], strides = [1, 1]} : vector<16x384xbf16> to vector<16x32xbf16>
    %112 = tpu.transpose %110, [1, 0] : vector<16x32xbf16> -> vector<32x16xbf16>
    %cst_40 = arith.constant dense<0.000000e+00> : vector<16x16xf32>
    %113 = tpu.matmul %109, %112, %cst_40 {dimension_numbers = #tpu.dot_dimension_numbers<[1], [0], [0], [1], [0, 0, 1, 1], [], []>} : vector<16x32xbf16>, vector<32x16xbf16>, vector<16x16xf32> -> vector<16x16xf32>
    %114 = arith.addf %113, %4 : vector<16x16xf32>
    %cst_41 = arith.constant dense<0xFF800000> : vector<16xf32>
    %115 = vector.multi_reduction <maximumf>, %114, %cst_41 [1] : vector<16x16xf32> to vector<16xf32>
    %116 = vector.shape_cast %115 : vector<16xf32> to vector<16x1xf32>
    %117 = vector.broadcast %116 : vector<16x1xf32> to vector<16x16xf32>
    %118 = arith.subf %114, %117 : vector<16x16xf32>
    %119 = math.exp %118 : vector<16x16xf32>
    %cst_42 = arith.constant dense<0.000000e+00> : vector<16xf32>
    %120 = vector.multi_reduction <add>, %119, %cst_42 [1] : vector<16x16xf32> to vector<16xf32>
    %121 = vector.shape_cast %120 : vector<16xf32> to vector<16x1xf32>
    %122 = tpu.reciprocal %121 {approx = true} : vector<16x1xf32> -> vector<16x1xf32>
    %123 = vector.broadcast %122 : vector<16x1xf32> to vector<16x16xf32>
    %124 = arith.mulf %119, %123 : vector<16x16xf32>
    %125 = arith.truncf %124 : vector<16x16xf32> to vector<16x16xbf16>
    %cst_43 = arith.constant dense<0.000000e+00> : vector<16x32xf32>
    %126 = tpu.matmul %125, %111, %cst_43 {dimension_numbers = #tpu.dot_dimension_numbers<[1], [0], [0], [1], [0, 0, 1, 1], [], []>} : vector<16x16xbf16>, vector<16x32xbf16>, vector<16x32xf32> -> vector<16x32xf32>
    %127 = arith.truncf %126 : vector<16x32xf32> to vector<16x32xbf16>
    %128 = vector.extract_strided_slice %41 {offsets = [96, 0], sizes = [32, 128], strides = [1, 1]} : vector<128x128xbf16> to vector<32x128xbf16>
    %cst_44 = arith.constant dense<0.000000e+00> : vector<16x128xf32>
    %129 = tpu.matmul %127, %128, %cst_44 {dimension_numbers = #tpu.dot_dimension_numbers<[1], [0], [0], [1], [0, 0, 1, 1], [], []>} : vector<16x32xbf16>, vector<32x128xbf16>, vector<16x128xf32> -> vector<16x128xf32>
    %130 = arith.addf %108, %129 : vector<16x128xf32>
    %131 = arith.addf %3, %130 : vector<16x128xf32>
    %c0_45 = arith.constant 0 : index
    %c0_46 = arith.constant 0 : index
    %c0_47 = arith.constant 0 : index
    %132 = vector.load %arg8[%c0_45, %c0_46, %c0_47] : memref<1x1x128xf32, #tpu.memory_space<vmem>>, vector<1x1x128xf32>
    %133 = vector.shape_cast %132 : vector<1x1x128xf32> to vector<1x128xf32>
    %134 = vector.broadcast %133 : vector<1x128xf32> to vector<16x128xf32>
    %135 = arith.addf %131, %134 : vector<16x128xf32>
    %c0_48 = arith.constant 0 : index
    %c0_49 = arith.constant 0 : index
    %c0_50 = arith.constant 0 : index
    %136 = vector.load %arg9[%c0_48, %c0_49, %c0_50] : memref<1x1x128xf32, #tpu.memory_space<vmem>>, vector<1x1x128xf32>
    %137 = vector.shape_cast %136 : vector<1x1x128xf32> to vector<1x128xf32>
    %c0_51 = arith.constant 0 : index
    %c0_52 = arith.constant 0 : index
    %c0_53 = arith.constant 0 : index
    %138 = vector.load %arg10[%c0_51, %c0_52, %c0_53] : memref<1x1x128xf32, #tpu.memory_space<vmem>>, vector<1x1x128xf32>
    %139 = vector.shape_cast %138 : vector<1x1x128xf32> to vector<1x128xf32>
    %cst_54 = arith.constant dense<0.000000e+00> : vector<16xf32>
    %140 = vector.multi_reduction <add>, %135, %cst_54 [1] : vector<16x128xf32> to vector<16xf32>
    %141 = vector.shape_cast %140 : vector<16xf32> to vector<16x1xf32>
    %cst_55 = arith.constant 1.280000e+02 : f32
    %142 = vector.broadcast %cst_55 : f32 to vector<16x1xf32>
    %143 = arith.divf %141, %142 : vector<16x1xf32>
    %144 = vector.broadcast %143 : vector<16x1xf32> to vector<16x128xf32>
    %145 = arith.subf %135, %144 : vector<16x128xf32>
    %146 = arith.mulf %145, %145 : vector<16x128xf32>
    %cst_56 = arith.constant dense<0.000000e+00> : vector<16xf32>
    %147 = vector.multi_reduction <add>, %146, %cst_56 [1] : vector<16x128xf32> to vector<16xf32>
    %148 = vector.shape_cast %147 : vector<16xf32> to vector<16x1xf32>
    %cst_57 = arith.constant 1.280000e+02 : f32
    %149 = vector.broadcast %cst_57 : f32 to vector<16x1xf32>
    %150 = arith.divf %148, %149 : vector<16x1xf32>
    %151 = vector.broadcast %143 : vector<16x1xf32> to vector<16x128xf32>
    %152 = arith.subf %135, %151 : vector<16x128xf32>
    %cst_58 = arith.constant 9.99999974E-6 : f32
    %153 = vector.broadcast %cst_58 : f32 to vector<16x1xf32>
    %154 = arith.addf %150, %153 : vector<16x1xf32>
    %155 = math.rsqrt %154 : vector<16x1xf32>
    %156 = vector.broadcast %155 : vector<16x1xf32> to vector<16x128xf32>
    %157 = arith.mulf %152, %156 : vector<16x128xf32>
    %158 = vector.broadcast %137 : vector<1x128xf32> to vector<16x128xf32>
    %159 = arith.mulf %157, %158 : vector<16x128xf32>
    %160 = vector.broadcast %139 : vector<1x128xf32> to vector<16x128xf32>
    %161 = arith.addf %159, %160 : vector<16x128xf32>
    %162 = arith.truncf %161 : vector<16x128xf32> to vector<16x128xbf16>
    %c0_59 = arith.constant 0 : index
    %c0_60 = arith.constant 0 : index
    %c0_61 = arith.constant 0 : index
    %163 = vector.load %arg11[%c0_59, %c0_60, %c0_61] : memref<1x128x256xbf16, #tpu.memory_space<vmem>>, vector<1x128x256xbf16>
    %164 = vector.shape_cast %163 : vector<1x128x256xbf16> to vector<128x256xbf16>
    %cst_62 = arith.constant dense<0.000000e+00> : vector<16x256xf32>
    %165 = tpu.matmul %162, %164, %cst_62 {dimension_numbers = #tpu.dot_dimension_numbers<[1], [0], [0], [1], [0, 0, 1, 1], [], []>} : vector<16x128xbf16>, vector<128x256xbf16>, vector<16x256xf32> -> vector<16x256xf32>
    %c0_63 = arith.constant 0 : index
    %c0_64 = arith.constant 0 : index
    %c0_65 = arith.constant 0 : index
    %166 = vector.load %arg12[%c0_63, %c0_64, %c0_65] : memref<1x1x256xf32, #tpu.memory_space<vmem>>, vector<1x1x256xf32>
    %167 = vector.shape_cast %166 : vector<1x1x256xf32> to vector<1x256xf32>
    %168 = vector.broadcast %167 : vector<1x256xf32> to vector<16x256xf32>
    %169 = arith.addf %165, %168 : vector<16x256xf32>
    %cst_66 = arith.constant 1.702000e+00 : f32
    %170 = vector.broadcast %cst_66 : f32 to vector<16x256xf32>
    %171 = arith.mulf %170, %169 : vector<16x256xf32>
    %172 = arith.negf %171 : vector<16x256xf32>
    %173 = math.exp %172 : vector<16x256xf32>
    %cst_67 = arith.constant 1.000000e+00 : f32
    %174 = vector.broadcast %cst_67 : f32 to vector<16x256xf32>
    %175 = arith.addf %174, %173 : vector<16x256xf32>
    %176 = arith.divf %174, %175 : vector<16x256xf32>
    %177 = arith.mulf %169, %176 : vector<16x256xf32>
    %178 = arith.truncf %177 : vector<16x256xf32> to vector<16x256xbf16>
    %c0_68 = arith.constant 0 : index
    %c0_69 = arith.constant 0 : index
    %c0_70 = arith.constant 0 : index
    %179 = vector.load %arg13[%c0_68, %c0_69, %c0_70] : memref<1x256x128xbf16, #tpu.memory_space<vmem>>, vector<1x256x128xbf16>
    %180 = vector.shape_cast %179 : vector<1x256x128xbf16> to vector<256x128xbf16>
    %cst_71 = arith.constant dense<0.000000e+00> : vector<16x128xf32>
    %181 = tpu.matmul %178, %180, %cst_71 {dimension_numbers = #tpu.dot_dimension_numbers<[1], [0], [0], [1], [0, 0, 1, 1], [], []>} : vector<16x256xbf16>, vector<256x128xbf16>, vector<16x128xf32> -> vector<16x128xf32>
    %c0_72 = arith.constant 0 : index
    %c0_73 = arith.constant 0 : index
    %c0_74 = arith.constant 0 : index
    %182 = vector.load %arg14[%c0_72, %c0_73, %c0_74] : memref<1x1x128xf32, #tpu.memory_space<vmem>>, vector<1x1x128xf32>
    %183 = vector.shape_cast %182 : vector<1x1x128xf32> to vector<1x128xf32>
    %184 = vector.broadcast %183 : vector<1x128xf32> to vector<16x128xf32>
    %185 = arith.addf %181, %184 : vector<16x128xf32>
    %186 = arith.addf %135, %185 : vector<16x128xf32>
    %c0_75 = arith.constant 0 : index
    %c0_76 = arith.constant 0 : index
    %187 = vector.load %arg18[%c0_75, %c0_76] : memref<16x128xf32, #tpu.memory_space<vmem>>, vector<16x128xf32>
    tpu.vector_store %arg18[%c0_75, %c0_76], %186 {strides = array<i32>} : memref<16x128xf32, #tpu.memory_space<vmem>>, vector<16x128xf32>,
    %c1_i32 = arith.constant 1 : i32
    %188 = arith.cmpi eq, %arg0, %c1_i32 : i32
    %189 = arith.extui %188 : i1 to i32
    %c0_i32_77 = arith.constant 0 : i32
    %190 = arith.cmpi ne, %189, %c0_i32_77 : i32
    scf.if %190 {
      %c0_78 = arith.constant 0 : index
      %c0_79 = arith.constant 0 : index
      %191 = vector.load %arg15[%c0_78, %c0_79] : memref<1x128xf32, #tpu.memory_space<vmem>>, vector<1x128xf32>
      %c0_80 = arith.constant 0 : index
      %c0_81 = arith.constant 0 : index
      %192 = vector.load %arg16[%c0_80, %c0_81] : memref<1x128xf32, #tpu.memory_space<vmem>>, vector<1x128xf32>
      %cst_82 = arith.constant dense<0.000000e+00> : vector<16xf32>
      %193 = vector.multi_reduction <add>, %186, %cst_82 [1] : vector<16x128xf32> to vector<16xf32>
      %194 = vector.shape_cast %193 : vector<16xf32> to vector<16x1xf32>
      %cst_83 = arith.constant 1.280000e+02 : f32
      %195 = vector.broadcast %cst_83 : f32 to vector<16x1xf32>
      %196 = arith.divf %194, %195 : vector<16x1xf32>
      %197 = vector.broadcast %196 : vector<16x1xf32> to vector<16x128xf32>
      %198 = arith.subf %186, %197 : vector<16x128xf32>
      %199 = arith.mulf %198, %198 : vector<16x128xf32>
      %cst_84 = arith.constant dense<0.000000e+00> : vector<16xf32>
      %200 = vector.multi_reduction <add>, %199, %cst_84 [1] : vector<16x128xf32> to vector<16xf32>
      %201 = vector.shape_cast %200 : vector<16xf32> to vector<16x1xf32>
      %cst_85 = arith.constant 1.280000e+02 : f32
      %202 = vector.broadcast %cst_85 : f32 to vector<16x1xf32>
      %203 = arith.divf %201, %202 : vector<16x1xf32>
      %204 = vector.broadcast %196 : vector<16x1xf32> to vector<16x128xf32>
      %205 = arith.subf %186, %204 : vector<16x128xf32>
      %cst_86 = arith.constant 9.99999974E-6 : f32
      %206 = vector.broadcast %cst_86 : f32 to vector<16x1xf32>
      %207 = arith.addf %203, %206 : vector<16x1xf32>
      %208 = math.rsqrt %207 : vector<16x1xf32>
      %209 = vector.broadcast %208 : vector<16x1xf32> to vector<16x128xf32>
      %210 = arith.mulf %205, %209 : vector<16x128xf32>
      %211 = vector.broadcast %191 : vector<1x128xf32> to vector<16x128xf32>
      %212 = arith.mulf %210, %211 : vector<16x128xf32>
      %213 = vector.broadcast %192 : vector<1x128xf32> to vector<16x128xf32>
      %214 = arith.addf %212, %213 : vector<16x128xf32>
      %c0_87 = arith.constant 0 : index
      %c0_88 = arith.constant 0 : index
      %215 = vector.load %arg17[%c0_87, %c0_88] : memref<16x128xf32, #tpu.memory_space<vmem>>, vector<16x128xf32>
      tpu.vector_store %arg17[%c0_87, %c0_88], %214 {strides = array<i32>} : memref<16x128xf32, #tpu.memory_space<vmem>>, vector<16x128xf32>,
    } else {
    }
    return
  }
  func.func @transform_0(%arg0: i32) -> (i32, i32) {
    %c0_i32 = arith.constant 0 : i32
    %c0_i32_0 = arith.constant 0 : i32
    %c0_i32_1 = arith.constant 0 : i32
    return %c0_i32, %c0_i32_0 : i32, i32
  }
  func.func @transform_1(%arg0: i32) -> (i32, i32) {
    %c0_i32 = arith.constant 0 : i32
    %c0_i32_0 = arith.constant 0 : i32
    %c0_i32_1 = arith.constant 0 : i32
    return %c0_i32, %c0_i32_0 : i32, i32
  }
  func.func @transform_2(%arg0: i32) -> (i32, i32, i32) {
    %c0_i32 = arith.constant 0 : i32
    %c0_i32_0 = arith.constant 0 : i32
    %c0_i32_1 = arith.constant 0 : i32
    return %arg0, %c0_i32, %c0_i32_0 : i32, i32, i32
  }
  func.func @transform_3(%arg0: i32) -> (i32, i32, i32) {
    %c0_i32 = arith.constant 0 : i32
    %c0_i32_0 = arith.constant 0 : i32
    %c0_i32_1 = arith.constant 0 : i32
    return %arg0, %c0_i32, %c0_i32_0 : i32, i32, i32
  }
  func.func @transform_4(%arg0: i32) -> (i32, i32, i32) {
    %c0_i32 = arith.constant 0 : i32
    %c0_i32_0 = arith.constant 0 : i32
    %c0_i32_1 = arith.constant 0 : i32
    return %arg0, %c0_i32, %c0_i32_0 : i32, i32, i32
  }
  func.func @transform_5(%arg0: i32) -> (i32, i32, i32) {
    %c0_i32 = arith.constant 0 : i32
    %c0_i32_0 = arith.constant 0 : i32
    %c0_i32_1 = arith.constant 0 : i32
    return %arg0, %c0_i32, %c0_i32_0 : i32, i32, i32
  }
  func.func @transform_6(%arg0: i32) -> (i32, i32, i32) {
    %c0_i32 = arith.constant 0 : i32
    %c0_i32_0 = arith.constant 0 : i32
    %c0_i32_1 = arith.constant 0 : i32
    return %arg0, %c0_i32, %c0_i32_0 : i32, i32, i32
  }
  func.func @transform_7(%arg0: i32) -> (i32, i32, i32) {
    %c0_i32 = arith.constant 0 : i32
    %c0_i32_0 = arith.constant 0 : i32
    %c0_i32_1 = arith.constant 0 : i32
    return %arg0, %c0_i32, %c0_i32_0 : i32, i32, i32
  }
  func.func @transform_8(%arg0: i32) -> (i32, i32, i32) {
    %c0_i32 = arith.constant 0 : i32
    %c0_i32_0 = arith.constant 0 : i32
    %c0_i32_1 = arith.constant 0 : i32
    return %arg0, %c0_i32, %c0_i32_0 : i32, i32, i32
  }
  func.func @transform_9(%arg0: i32) -> (i32, i32, i32) {
    %c0_i32 = arith.constant 0 : i32
    %c0_i32_0 = arith.constant 0 : i32
    %c0_i32_1 = arith.constant 0 : i32
    return %arg0, %c0_i32, %c0_i32_0 : i32, i32, i32
  }
  func.func @transform_10(%arg0: i32) -> (i32, i32, i32) {
    %c0_i32 = arith.constant 0 : i32
    %c0_i32_0 = arith.constant 0 : i32
    %c0_i32_1 = arith.constant 0 : i32
    return %arg0, %c0_i32, %c0_i32_0 : i32, i32, i32
  }
  func.func @transform_11(%arg0: i32) -> (i32, i32, i32) {
    %c0_i32 = arith.constant 0 : i32
    %c0_i32_0 = arith.constant 0 : i32
    %c0_i32_1 = arith.constant 0 : i32
    return %arg0, %c0_i32, %c0_i32_0 : i32, i32, i32
  }
  func.func @transform_12(%arg0: i32) -> (i32, i32, i32) {
    %c0_i32 = arith.constant 0 : i32
    %c0_i32_0 = arith.constant 0 : i32
    %c0_i32_1 = arith.constant 0 : i32
    return %arg0, %c0_i32, %c0_i32_0 : i32, i32, i32
  }
  func.func @transform_13(%arg0: i32) -> (i32, i32, i32) {
    %c0_i32 = arith.constant 0 : i32
    %c0_i32_0 = arith.constant 0 : i32
    %c0_i32_1 = arith.constant 0 : i32
    return %arg0, %c0_i32, %c0_i32_0 : i32, i32, i32
  }
  func.func @transform_14(%arg0: i32) -> (i32, i32) {
    %c0_i32 = arith.constant 0 : i32
    %c0_i32_0 = arith.constant 0 : i32
    %c0_i32_1 = arith.constant 0 : i32
    return %c0_i32, %c0_i32_0 : i32, i32
  }
  func.func @transform_15(%arg0: i32) -> (i32, i32) {
    %c0_i32 = arith.constant 0 : i32
    %c0_i32_0 = arith.constant 0 : i32
    %c0_i32_1 = arith.constant 0 : i32
    return %c0_i32, %c0_i32_0 : i32, i32
  }
  func.func @transform_16(%arg0: i32) -> (i32, i32) {
    %c0_i32 = arith.constant 0 : i32
    %c0_i32_0 = arith.constant 0 : i32
    %c0_i32_1 = arith.constant 0 : i32
    return %c0_i32, %c0_i32_0 : i32, i32
  }
}

</mosaic_0001>

<llo_original>
// kernel: tpu_custom_call.1
$region0: #{tpu_custom_call.1}
  #allocation0 [shape = 'u32[]', space=smem, size = 0x4, offset = 0x4, fixed_abs, tag = 'smem constant byte address 0x4 - core index']
  #allocation1 [shape = 'u32[144,128]{1,0:T(1,128)}', space=vmem, size = 0x12000, scoped, tag = 'internal scratch']
  #allocation2 [shape = 'f32[16,128]{1,0:T(8,128)}', space=vmem, size = 0x2000, scoped, tag = 'scratch operand']
  %s0 = inlined_call_operand.hbm [shape: f32[16,128], index: 0, kind: input, shape index: {}]
  %s1 = inlined_call_operand.hbm [shape: f32[16,16], index: 1, kind: input, shape index: {}]
  %s2 = inlined_call_operand.hbm [shape: f32[2,1,128], index: 2, kind: input, shape index: {}]
  %s3 = inlined_call_operand.hbm [shape: f32[2,1,128], index: 3, kind: input, shape index: {}]
  %s4 = inlined_call_operand.hbm [shape: bf16[2,128,384], index: 4, kind: input, shape index: {}]
  %s5 = inlined_call_operand.vmem [shape: f32[2,1,384], index: 5, kind: input, shape index: {}]
  %s6 = inlined_call_operand.hbm [shape: bf16[2,128,128], index: 6, kind: input, shape index: {}]
  %s7 = inlined_call_operand.vmem [shape: f32[2,1,128], index: 7, kind: input, shape index: {}]
  %s8 = inlined_call_operand.vmem [shape: f32[2,1,128], index: 8, kind: input, shape index: {}]
  %s9 = inlined_call_operand.vmem [shape: f32[2,1,128], index: 9, kind: input, shape index: {}]
  %s10 = inlined_call_operand.hbm [shape: bf16[2,128,256], index: 10, kind: input, shape index: {}]
  %s11 = inlined_call_operand.vmem [shape: f32[2,1,256], index: 11, kind: input, shape index: {}]
  %s12 = inlined_call_operand.hbm [shape: bf16[2,256,128], index: 12, kind: input, shape index: {}]
  %s13 = inlined_call_operand.vmem [shape: f32[2,1,128], index: 13, kind: input, shape index: {}]
  %s14 = inlined_call_operand.vmem [shape: f32[1,128], index: 14, kind: input, shape index: {}]
  %s15 = inlined_call_operand.vmem [shape: f32[1,128], index: 15, kind: input, shape index: {}]
  %s16 = inlined_call_operand.hbm [shape: f32[16,128], index: 16, kind: output, shape index: {}]
  %s17 = sld [smem:[#allocation0]]
  $region137: #{tpu_custom_call.1} parent=0
    _
  %s19 = ssub.s32 1, %s17
  %s20 = scalar_select 0, %s19, %s17
  $region1: #{tpu_custom_call.1} parent=0
    #allocation3 [shape = 'u8[8192]{0}', space=vmem, size = 0x2000, scoped, tag = 'input window, operand 0, single buffered']
    #allocation4 [shape = 's32[2]{0}', space=sflag, size = 0x8, scoped, tag = 'scoped memory for tpu_custom_call.1']
    #allocation5 [shape = 's32[2]{0}', space=sflag, size = 0x8, scoped, tag = 'scoped memory for tpu_custom_call.1']
    #allocation6 [shape = 'u8[8192]{0}', space=vmem, size = 0x2000, scoped, tag = 'input window, operand 1, single buffered']
    #allocation7 [shape = 's32[1]{0}', space=sflag, size = 0x4, scoped, tag = 'scoped memory for tpu_custom_call.1']
    #allocation8 [shape = 'u8[1024]{0}', space=vmem, size = 0x400, scoped, tag = 'input window, operand 2']
    #allocation9 [shape = 'u8[1024]{0}', space=vmem, size = 0x400, scoped, tag = 'input window, operand 3']
    #allocation10 [shape = 'u8[196608]{0}', space=vmem, size = 0x30000, scoped, tag = 'input window, operand 4']
    #allocation11 [shape = 'u8[65536]{0}', space=vmem, size = 0x10000, scoped, tag = 'input window, operand 6']
    #allocation12 [shape = 'u8[131072]{0}', space=vmem, size = 0x20000, scoped, tag = 'input window, operand 10']
    #allocation13 [shape = 'u8[131072]{0}', space=vmem, size = 0x20000, scoped, tag = 'input window, operand 12']
    #allocation14 [shape = 'u8[8192]{0}', space=vmem, size = 0x2000, scoped, tag = 'output window, operand 0, single buffered']
    %21 = vsyncpa [#allocation4], 0
    %22 = vsyncpa [#allocation7], 0
    %23 = vsyncpa [#allocation5], 0
    loop: start=0, step=1, limit=4
    $region2: #{tpu_custom_call.1} parent=1 // loop_pre_header
      _
    $region3: #{tpu_custom_call.1} parent=1 // loop_header
      %s25 = sphi 0, %s29
      %p26 = scmp.ge.s32.totalorder %s25, 4
      %s33 = sphi 0, %s33
      %s35 = sphi 0, %s33
      %s36 = sphi 0, %s35
      %s50 = sphi 0, %s36
      %s54 = sphi 0, %s54
      %s56 = sphi 0, %s54
      %s57 = sphi 0, %s56
      %s71 = sphi 0, %s57
      %s77 = sphi 0, %s79
      %s80 = sphi 0, %s77
      %s81 = sphi 0, %s80
      %s97 = sphi 0, %s81
      %s103 = sphi 0, %s105
      %s106 = sphi 0, %s103
      %s107 = sphi 0, %s106
      %s123 = sphi 0, %s107
      %s129 = sphi 0, %s131
      %s132 = sphi 0, %s129
      %s133 = sphi 0, %s132
      %s149 = sphi 0, %s133
      %s155 = sphi 0, %s157
      %s158 = sphi 0, %s155
      %s159 = sphi 0, %s158
      %s175 = sphi 0, %s159
      %s181 = sphi 0, %s183
      %s184 = sphi 0, %s181
      %s185 = sphi 0, %s184
      %s201 = sphi 0, %s185
      %s207 = sphi 0, %s209
      %s210 = sphi 0, %s207
      %s211 = sphi 0, %s210
      %s227 = sphi 0, %s211
      %s233 = sphi 0, %s235
      %s236 = sphi 0, %s233
      %s237 = sphi 0, %s236
      %s253 = sphi 0, %s237
      %s259 = sphi 0, %s261
      %s262 = sphi 0, %s259
      %s263 = sphi 0, %s262
      %s279 = sphi 0, %s263
      %s285 = sphi 0, %s287
      %s288 = sphi 0, %s285
      %s289 = sphi 0, %s288
      %s305 = sphi 0, %s289
      %s311 = sphi 0, %s313
      %s314 = sphi 0, %s311
      %s315 = sphi 0, %s314
      %s331 = sphi 0, %s315
      %s337 = sphi 0, %s339
      %s340 = sphi 0, %s337
      %s341 = sphi 0, %s340
      %s357 = sphi 0, %s341
      %s363 = sphi 0, %s365
      %s366 = sphi 0, %s363
      %s367 = sphi 0, %s366
      %s383 = sphi 0, %s367
      %s387 = sphi 0, %s387
      %s389 = sphi 0, %s387
      %s390 = sphi 0, %s389
      %s404 = sphi 0, %s390
      %s408 = sphi 0, %s408
      %s410 = sphi 0, %s408
      %s411 = sphi 0, %s410
      %s425 = sphi 0, %s411
      %s429 = sphi 0, %s429
      %s431 = sphi 0, %s429
      %s432 = sphi 0, %s431
      %s446 = sphi 0, %s432
    $region4: #{tpu_custom_call.1} parent=1 // loop_header_branch
      %28 = sbr.rel (%p26) target = $region8
    $region5: #{tpu_custom_call.1} parent=1 // loop_body
      %s30 = ssub.s32 %s25, 1
      %s31 = ssub.s32 %s25, 2
      %s32 = sadd.s32 %s25, 1
      %s34 = sadd.s32 %s33, 1
      %p37 = scmp.eq.s32.totalorder %s25, 1
      %p38 = scmp.ne.s32.totalorder %s33, %s35
      %p39 = scmp.eq.s32.totalorder %s25, 0
      %p40 = por %p38, %p39
      %p41 = scmp.ne.s32.totalorder %s33, %s35
      %p42 = scmp.eq.s32.totalorder %s30, 1
      %p43 = por %p41, %p42
      %p44 = scmp.ne.s32.totalorder %s35, %s36
      %p45 = scmp.eq.s32.totalorder %s30, 0
      %p46 = por %p44, %p45
      %p47 = scmp.ne.s32.totalorder %s35, %s36
      %p48 = scmp.eq.s32.totalorder %s31, 1
      %p49 = por %p47, %p48
      %p51 = scmp.ne.s32.totalorder %s36, %s50
      %p52 = scmp.eq.s32.totalorder %s31, 0
      %p53 = por %p51, %p52
      %s55 = sadd.s32 %s54, 1
      %p58 = scmp.eq.s32.totalorder %s25, 1
      %p59 = scmp.ne.s32.totalorder %s54, %s56
      %p60 = scmp.eq.s32.totalorder %s25, 0
      %p61 = por %p59, %p60
      %p62 = scmp.ne.s32.totalorder %s54, %s56
      %p63 = scmp.eq.s32.totalorder %s30, 1
      %p64 = por %p62, %p63
      %p65 = scmp.ne.s32.totalorder %s56, %s57
      %p66 = scmp.eq.s32.totalorder %s30, 0
      %p67 = por %p65, %p66
      %p68 = scmp.ne.s32.totalorder %s56, %s57
      %p69 = scmp.eq.s32.totalorder %s31, 1
      %p70 = por %p68, %p69
      %p72 = scmp.ne.s32.totalorder %s57, %s71
      %p73 = scmp.eq.s32.totalorder %s31, 0
      %p74 = por %p72, %p73
      %s75 = ssub.s32 %s25, %s32
      %p76 = scmp.eq.s32.totalorder %s75, 0
      %s78 = sadd.s32 %s77, 1
      %s79 = scalar_select %p76, %s77, %s78
      %p82 = pneg %p76
      %p83 = scmp.eq.s32.totalorder %s25, 1
      %p84 = por %p82, %p83
      %p85 = scmp.ne.s32.totalorder %s77, %s80
      %p86 = scmp.eq.s32.totalorder %s25, 0
      %p87 = por %p85, %p86
      %p88 = scmp.ne.s32.totalorder %s77, %s80
      %p89 = scmp.eq.s32.totalorder %s30, 1
      %p90 = por %p88, %p89
      %p91 = scmp.ne.s32.totalorder %s80, %s81
      %p92 = scmp.eq.s32.totalorder %s30, 0
      %p93 = por %p91, %p92
      %p94 = scmp.ne.s32.totalorder %s80, %s81
      %p95 = scmp.eq.s32.totalorder %s31, 1
      %p96 = por %p94, %p95
      %p98 = scmp.ne.s32.totalorder %s81, %s97
      %p99 = scmp.eq.s32.totalorder %s31, 0
      %p100 = por %p98, %p99
      %s101 = ssub.s32 %s25, %s32
      %p102 = scmp.eq.s32.totalorder %s101, 0
      %s104 = sadd.s32 %s103, 1
      %s105 = scalar_select %p102, %s103, %s104
      %p108 = pneg %p102
      %p109 = scmp.eq.s32.totalorder %s25, 1
      %p110 = por %p108, %p109
      %p111 = scmp.ne.s32.totalorder %s103, %s106
      %p112 = scmp.eq.s32.totalorder %s25, 0
      %p113 = por %p111, %p112
      %p114 = scmp.ne.s32.totalorder %s103, %s106
      %p115 = scmp.eq.s32.totalorder %s30, 1
      %p116 = por %p114, %p115
      %p117 = scmp.ne.s32.totalorder %s106, %s107
      %p118 = scmp.eq.s32.totalorder %s30, 0
      %p119 = por %p117, %p118
      %p120 = scmp.ne.s32.totalorder %s106, %s107
      %p121 = scmp.eq.s32.totalorder %s31, 1
      %p122 = por %p120, %p121
      %p124 = scmp.ne.s32.totalorder %s107, %s123
      %p125 = scmp.eq.s32.totalorder %s31, 0
      %p126 = por %p124, %p125
      %s127 = ssub.s32 %s25, %s32
      %p128 = scmp.eq.s32.totalorder %s127, 0
      %s130 = sadd.s32 %s129, 1
      %s131 = scalar_select %p128, %s129, %s130
      %p134 = pneg %p128
      %p135 = scmp.eq.s32.totalorder %s25, 1
      %p136 = por %p134, %p135
      %p137 = scmp.ne.s32.totalorder %s129, %s132
      %p138 = scmp.eq.s32.totalorder %s25, 0
      %p139 = por %p137, %p138
      %p140 = scmp.ne.s32.totalorder %s129, %s132
      %p141 = scmp.eq.s32.totalorder %s30, 1
      %p142 = por %p140, %p141
      %p143 = scmp.ne.s32.totalorder %s132, %s133
      %p144 = scmp.eq.s32.totalorder %s30, 0
      %p145 = por %p143, %p144
      %p146 = scmp.ne.s32.totalorder %s132, %s133
      %p147 = scmp.eq.s32.totalorder %s31, 1
      %p148 = por %p146, %p147
      %p150 = scmp.ne.s32.totalorder %s133, %s149
      %p151 = scmp.eq.s32.totalorder %s31, 0
      %p152 = por %p150, %p151
      %s153 = ssub.s32 %s25, %s32
      %p154 = scmp.eq.s32.totalorder %s153, 0
      %s156 = sadd.s32 %s155, 1
      %s157 = scalar_select %p154, %s155, %s156
      %p160 = pneg %p154
      %p161 = scmp.eq.s32.totalorder %s25, 1
      %p162 = por %p160, %p161
      %p163 = scmp.ne.s32.totalorder %s155, %s158
      %p164 = scmp.eq.s32.totalorder %s25, 0
      %p165 = por %p163, %p164
      %p166 = scmp.ne.s32.totalorder %s155, %s158
      %p167 = scmp.eq.s32.totalorder %s30, 1
      %p168 = por %p166, %p167
      %p169 = scmp.ne.s32.totalorder %s158, %s159
      %p170 = scmp.eq.s32.totalorder %s30, 0
      %p171 = por %p169, %p170
      %p172 = scmp.ne.s32.totalorder %s158, %s159
      %p173 = scmp.eq.s32.totalorder %s31, 1
      %p174 = por %p172, %p173
      %p176 = scmp.ne.s32.totalorder %s159, %s175
      %p177 = scmp.eq.s32.totalorder %s31, 0
      %p178 = por %p176, %p177
      %s179 = ssub.s32 %s25, %s32
      %p180 = scmp.eq.s32.totalorder %s179, 0
      %s182 = sadd.s32 %s181, 1
      %s183 = scalar_select %p180, %s181, %s182
      %p186 = pneg %p180
      %p187 = scmp.eq.s32.totalorder %s25, 1
      %p188 = por %p186, %p187
      %p189 = scmp.ne.s32.totalorder %s181, %s184
      %p190 = scmp.eq.s32.totalorder %s25, 0
      %p191 = por %p189, %p190
      %p192 = scmp.ne.s32.totalorder %s181, %s184
      %p193 = scmp.eq.s32.totalorder %s30, 1
      %p194 = por %p192, %p193
      %p195 = scmp.ne.s32.totalorder %s184, %s185
      %p196 = scmp.eq.s32.totalorder %s30, 0
      %p197 = por %p195, %p196
      %p198 = scmp.ne.s32.totalorder %s184, %s185
      %p199 = scmp.eq.s32.totalorder %s31, 1
      %p200 = por %p198, %p199
      %p202 = scmp.ne.s32.totalorder %s185, %s201
      %p203 = scmp.eq.s32.totalorder %s31, 0
      %p204 = por %p202, %p203
      %s205 = ssub.s32 %s25, %s32
      %p206 = scmp.eq.s32.totalorder %s205, 0
      %s208 = sadd.s32 %s207, 1
      %s209 = scalar_select %p206, %s207, %s208
      %p212 = pneg %p206
      %p213 = scmp.eq.s32.totalorder %s25, 1
      %p214 = por %p212, %p213
      %p215 = scmp.ne.s32.totalorder %s207, %s210
      %p216 = scmp.eq.s32.totalorder %s25, 0
      %p217 = por %p215, %p216
      %p218 = scmp.ne.s32.totalorder %s207, %s210
      %p219 = scmp.eq.s32.totalorder %s30, 1
      %p220 = por %p218, %p219
      %p221 = scmp.ne.s32.totalorder %s210, %s211
      %p222 = scmp.eq.s32.totalorder %s30, 0
      %p223 = por %p221, %p222
      %p224 = scmp.ne.s32.totalorder %s210, %s211
      %p225 = scmp.eq.s32.totalorder %s31, 1
      %p226 = por %p224, %p225
      %p228 = scmp.ne.s32.totalorder %s211, %s227
      %p229 = scmp.eq.s32.totalorder %s31, 0
      %p230 = por %p228, %p229
      %s231 = ssub.s32 %s25, %s32
      %p232 = scmp.eq.s32.totalorder %s231, 0
      %s234 = sadd.s32 %s233, 1
      %s235 = scalar_select %p232, %s233, %s234
      %p238 = pneg %p232
      %p239 = scmp.eq.s32.totalorder %s25, 1
      %p240 = por %p238, %p239
      %p241 = scmp.ne.s32.totalorder %s233, %s236
      %p242 = scmp.eq.s32.totalorder %s25, 0
      %p243 = por %p241, %p242
      %p244 = scmp.ne.s32.totalorder %s233, %s236
      %p245 = scmp.eq.s32.totalorder %s30, 1
      %p246 = por %p244, %p245
      %p247 = scmp.ne.s32.totalorder %s236, %s237
      %p248 = scmp.eq.s32.totalorder %s30, 0
      %p249 = por %p247, %p248
      %p250 = scmp.ne.s32.totalorder %s236, %s237
      %p251 = scmp.eq.s32.totalorder %s31, 1
      %p252 = por %p250, %p251
      %p254 = scmp.ne.s32.totalorder %s237, %s253
      %p255 = scmp.eq.s32.totalorder %s31, 0
      %p256 = por %p254, %p255
      %s257 = ssub.s32 %s25, %s32
      %p258 = scmp.eq.s32.totalorder %s257, 0
      %s260 = sadd.s32 %s259, 1
      %s261 = scalar_select %p258, %s259, %s260
      %p264 = pneg %p258
      %p265 = scmp.eq.s32.totalorder %s25, 1
      %p266 = por %p264, %p265
      %p267 = scmp.ne.s32.totalorder %s259, %s262
      %p268 = scmp.eq.s32.totalorder %s25, 0
      %p269 = por %p267, %p268
      %p270 = scmp.ne.s32.totalorder %s259, %s262
      %p271 = scmp.eq.s32.totalorder %s30, 1
      %p272 = por %p270, %p271
      %p273 = scmp.ne.s32.totalorder %s262, %s263
      %p274 = scmp.eq.s32.totalorder %s30, 0
      %p275 = por %p273, %p274
      %p276 = scmp.ne.s32.totalorder %s262, %s263
      %p277 = scmp.eq.s32.totalorder %s31, 1
      %p278 = por %p276, %p277
      %p280 = scmp.ne.s32.totalorder %s263, %s279
      %p281 = scmp.eq.s32.totalorder %s31, 0
      %p282 = por %p280, %p281
      %s283 = ssub.s32 %s25, %s32
      %p284 = scmp.eq.s32.totalorder %s283, 0
      %s286 = sadd.s32 %s285, 1
      %s287 = scalar_select %p284, %s285, %s286
      %p290 = pneg %p284
      %p291 = scmp.eq.s32.totalorder %s25, 1
      %p292 = por %p290, %p291
      %p293 = scmp.ne.s32.totalorder %s285, %s288
      %p294 = scmp.eq.s32.totalorder %s25, 0
      %p295 = por %p293, %p294
      %p296 = scmp.ne.s32.totalorder %s285, %s288
      %p297 = scmp.eq.s32.totalorder %s30, 1
      %p298 = por %p296, %p297
      %p299 = scmp.ne.s32.totalorder %s288, %s289
      %p300 = scmp.eq.s32.totalorder %s30, 0
      %p301 = por %p299, %p300
      %p302 = scmp.ne.s32.totalorder %s288, %s289
      %p303 = scmp.eq.s32.totalorder %s31, 1
      %p304 = por %p302, %p303
      %p306 = scmp.ne.s32.totalorder %s289, %s305
      %p307 = scmp.eq.s32.totalorder %s31, 0
      %p308 = por %p306, %p307
      %s309 = ssub.s32 %s25, %s32
      %p310 = scmp.eq.s32.totalorder %s309, 0
      %s312 = sadd.s32 %s311, 1
      %s313 = scalar_select %p310, %s311, %s312
      %p316 = pneg %p310
      %p317 = scmp.eq.s32.totalorder %s25, 1
      %p318 = por %p316, %p317
      %p319 = scmp.ne.s32.totalorder %s311, %s314
      %p320 = scmp.eq.s32.totalorder %s25, 0
      %p321 = por %p319, %p320
      %p322 = scmp.ne.s32.totalorder %s311, %s314
      %p323 = scmp.eq.s32.totalorder %s30, 1
      %p324 = por %p322, %p323
      %p325 = scmp.ne.s32.totalorder %s314, %s315
      %p326 = scmp.eq.s32.totalorder %s30, 0
      %p327 = por %p325, %p326
      %p328 = scmp.ne.s32.totalorder %s314, %s315
      %p329 = scmp.eq.s32.totalorder %s31, 1
      %p330 = por %p328, %p329
      %p332 = scmp.ne.s32.totalorder %s315, %s331
      %p333 = scmp.eq.s32.totalorder %s31, 0
      %p334 = por %p332, %p333
      %s335 = ssub.s32 %s25, %s32
      %p336 = scmp.eq.s32.totalorder %s335, 0
      %s338 = sadd.s32 %s337, 1
      %s339 = scalar_select %p336, %s337, %s338
      %p342 = pneg %p336
      %p343 = scmp.eq.s32.totalorder %s25, 1
      %p344 = por %p342, %p343
      %p345 = scmp.ne.s32.totalorder %s337, %s340
      %p346 = scmp.eq.s32.totalorder %s25, 0
      %p347 = por %p345, %p346
      %p348 = scmp.ne.s32.totalorder %s337, %s340
      %p349 = scmp.eq.s32.totalorder %s30, 1
      %p350 = por %p348, %p349
      %p351 = scmp.ne.s32.totalorder %s340, %s341
      %p352 = scmp.eq.s32.totalorder %s30, 0
      %p353 = por %p351, %p352
      %p354 = scmp.ne.s32.totalorder %s340, %s341
      %p355 = scmp.eq.s32.totalorder %s31, 1
      %p356 = por %p354, %p355
      %p358 = scmp.ne.s32.totalorder %s341, %s357
      %p359 = scmp.eq.s32.totalorder %s31, 0
      %p360 = por %p358, %p359
      %s361 = ssub.s32 %s25, %s32
      %p362 = scmp.eq.s32.totalorder %s361, 0
      %s364 = sadd.s32 %s363, 1
      %s365 = scalar_select %p362, %s363, %s364
      %p368 = pneg %p362
      %p369 = scmp.eq.s32.totalorder %s25, 1
      %p370 = por %p368, %p369
      %p371 = scmp.ne.s32.totalorder %s363, %s366
      %p372 = scmp.eq.s32.totalorder %s25, 0
      %p373 = por %p371, %p372
      %p374 = scmp.ne.s32.totalorder %s363, %s366
      %p375 = scmp.eq.s32.totalorder %s30, 1
      %p376 = por %p374, %p375
      %p377 = scmp.ne.s32.totalorder %s366, %s367
      %p378 = scmp.eq.s32.totalorder %s30, 0
      %p379 = por %p377, %p378
      %p380 = scmp.ne.s32.totalorder %s366, %s367
      %p381 = scmp.eq.s32.totalorder %s31, 1
      %p382 = por %p380, %p381
      %p384 = scmp.ne.s32.totalorder %s367, %s383
      %p385 = scmp.eq.s32.totalorder %s31, 0
      %p386 = por %p384, %p385
      %s388 = sadd.s32 %s387, 1
      %p391 = scmp.eq.s32.totalorder %s25, 1
      %p392 = scmp.ne.s32.totalorder %s387, %s389
      %p393 = scmp.eq.s32.totalorder %s25, 0
      %p394 = por %p392, %p393
      %p395 = scmp.ne.s32.totalorder %s387, %s389
      %p396 = scmp.eq.s32.totalorder %s30, 1
      %p397 = por %p395, %p396
      %p398 = scmp.ne.s32.totalorder %s389, %s390
      %p399 = scmp.eq.s32.totalorder %s30, 0
      %p400 = por %p398, %p399
      %p401 = scmp.ne.s32.totalorder %s389, %s390
      %p402 = scmp.eq.s32.totalorder %s31, 1
      %p403 = por %p401, %p402
      %p405 = scmp.ne.s32.totalorder %s390, %s404
      %p406 = scmp.eq.s32.totalorder %s31, 0
      %p407 = por %p405, %p406
      %s409 = sadd.s32 %s408, 1
      %p412 = scmp.eq.s32.totalorder %s25, 1
      %p413 = scmp.ne.s32.totalorder %s408, %s410
      %p414 = scmp.eq.s32.totalorder %s25, 0
      %p415 = por %p413, %p414
      %p416 = scmp.ne.s32.totalorder %s408, %s410
      %p417 = scmp.eq.s32.totalorder %s30, 1
      %p418 = por %p416, %p417
      %p419 = scmp.ne.s32.totalorder %s410, %s411
      %p420 = scmp.eq.s32.totalorder %s30, 0
      %p421 = por %p419, %p420
      %p422 = scmp.ne.s32.totalorder %s410, %s411
      %p423 = scmp.eq.s32.totalorder %s31, 1
      %p424 = por %p422, %p423
      %p426 = scmp.ne.s32.totalorder %s411, %s425
      %p427 = scmp.eq.s32.totalorder %s31, 0
      %p428 = por %p426, %p427
      %s430 = sadd.s32 %s429, 1
      %p433 = scmp.eq.s32.totalorder %s25, 1
      %p434 = scmp.ne.s32.totalorder %s429, %s431
      %p435 = scmp.eq.s32.totalorder %s25, 0
      %p436 = por %p434, %p435
      %p437 = scmp.ne.s32.totalorder %s429, %s431
      %p438 = scmp.eq.s32.totalorder %s30, 1
      %p439 = por %p437, %p438
      %p440 = scmp.ne.s32.totalorder %s431, %s432
      %p441 = scmp.eq.s32.totalorder %s30, 0
      %p442 = por %p440, %p441
      %p443 = scmp.ne.s32.totalorder %s431, %s432
      %p444 = scmp.eq.s32.totalorder %s31, 1
      %p445 = por %p443, %p444
      %p447 = scmp.ne.s32.totalorder %s432, %s446
      %p448 = scmp.eq.s32.totalorder %s31, 0
      %p449 = por %p447, %p448
      %p450 = scmp.le.s32.totalorder 1, %s25
      %p451 = scmp.lt.s32.totalorder %s25, 3
      %p452 = pnand %p450, %p451
      %p453 = pneg %p452
      // Predicated region
      $region9: #{tpu_custom_call.1} parent=5 // pred_check
        _
      $region10: #{tpu_custom_call.1} parent=5 // pred_check_branch
        %455 = sbr.rel (%p452) target = $region12
      $region11: #{tpu_custom_call.1} parent=5 // pred_region
        %s456 = ssub.s32 %s25, 1
        // Predicated region
        $region13: #{tpu_custom_call.1} parent=11 // pred_check
          %p457 = pneg %p46
        $region14: #{tpu_custom_call.1} parent=11 // pred_check_branch
          %459 = sbr.rel (%p457) target = $region16
        $region15: #{tpu_custom_call.1} parent=11 // pred_region
          %s461 = ssub.s32 256, 256
          %462 = vsyncadd [#allocation4], %s461
          %s463 = sshll.u32 [#allocation3], 4
          %s464 = int_to_ptr.vmem [resolvable:$true] %s463
          %469 = dma.hbm_to_vmem [thread:$0]  %s0, 256, %s464, [#allocation4], 128, 128, 8
        $region16: #{tpu_custom_call.1} parent=11 // pred_fallthru
          _
        // Predicated region
        $region17: #{tpu_custom_call.1} parent=11 // pred_check
          %p470 = pneg %p67
        $region18: #{tpu_custom_call.1} parent=11 // pred_check_branch
          %472 = sbr.rel (%p470) target = $region20
        $region19: #{tpu_custom_call.1} parent=11 // pred_region
          %s474 = ssub.s32 256, 256
          %475 = vsyncadd [#allocation7], %s474
          %s476 = sshll.u32 [#allocation6], 4
          %s477 = int_to_ptr.vmem [resolvable:$true] %s476
          %482 = dma.hbm_to_vmem [thread:$0]  %s1, 256, %s477, [#allocation7], 128, 128, 8
        $region20: #{tpu_custom_call.1} parent=11 // pred_fallthru
          _
        // Predicated region
        $region21: #{tpu_custom_call.1} parent=11 // pred_check
          %p483 = pneg %p400
        $region22: #{tpu_custom_call.1} parent=11 // pred_check_branch
          %485 = sbr.rel (%p483) target = $region24
        $region23: #{tpu_custom_call.1} parent=11 // pred_region
          _
        $region24: #{tpu_custom_call.1} parent=11 // pred_fallthru
          _
        // Predicated region
        $region25: #{tpu_custom_call.1} parent=11 // pred_check
          %p486 = pneg %p421
        $region26: #{tpu_custom_call.1} parent=11 // pred_check_branch
          %488 = sbr.rel (%p486) target = $region28
        $region27: #{tpu_custom_call.1} parent=11 // pred_region
          _
        $region28: #{tpu_custom_call.1} parent=11 // pred_fallthru
          _
      $region12: #{tpu_custom_call.1} parent=5 // pred_fallthru
        _
      %p489 = scmp.lt.s32.totalorder %s25, 2
      // Predicated region
      $region29: #{tpu_custom_call.1} parent=5 // pred_check
        %p490 = pneg %p489
      $region30: #{tpu_custom_call.1} parent=5 // pred_check_branch
        %492 = sbr.rel (%p490) target = $region32
      $region31: #{tpu_custom_call.1} parent=5 // pred_region
        // Predicated region
        $region33: #{tpu_custom_call.1} parent=31 // pred_check
          %p493 = pneg %p87
        $region34: #{tpu_custom_call.1} parent=31 // pred_check_branch
          %495 = sbr.rel (%p493) target = $region36
        $region35: #{tpu_custom_call.1} parent=31 // pred_region
          %s496 = sand.u32 %s25, 1
          %s497 = scalar_lea.sflag [#allocation4], %s496
          %s498 = sand.u32 %s77, 1
          %s499 = scalar_lea.vmem [#allocation8], %s498
          %s501 = ssub.s32 16, 16
          %502 = vsyncadd %s497, %s501
          %s503 = smul.addr %s25, 16
          %s504 = scalar_lea.hbm %s2, %s503
          %s506 = sshll.u32 %s499, 4
          %s507 = int_to_ptr.vmem [resolvable:$true] %s506
          %509 = dma.hbm_to_vmem [thread:$0]  %s504, 16, %s507, %s497
        $region36: #{tpu_custom_call.1} parent=31 // pred_fallthru
          _
        // Predicated region
        $region37: #{tpu_custom_call.1} parent=31 // pred_check
          %p510 = pneg %p113
        $region38: #{tpu_custom_call.1} parent=31 // pred_check_branch
          %512 = sbr.rel (%p510) target = $region40
        $region39: #{tpu_custom_call.1} parent=31 // pred_region
          %s513 = sand.u32 %s25, 1
          %s514 = scalar_lea.sflag [#allocation4], %s513
          %s515 = sand.u32 %s103, 1
          %s516 = scalar_lea.vmem [#allocation9], %s515
          %s518 = ssub.s32 16, 16
          %519 = vsyncadd %s514, %s518
          %s520 = smul.addr %s25, 16
          %s521 = scalar_lea.hbm %s3, %s520
          %s523 = sshll.u32 %s516, 4
          %s524 = int_to_ptr.vmem [resolvable:$true] %s523
          %526 = dma.hbm_to_vmem [thread:$0]  %s521, 16, %s524, %s514
        $region40: #{tpu_custom_call.1} parent=31 // pred_fallthru
          _
        // Predicated region
        $region41: #{tpu_custom_call.1} parent=31 // pred_check
          %p527 = pneg %p139
        $region42: #{tpu_custom_call.1} parent=31 // pred_check_branch
          %529 = sbr.rel (%p527) target = $region44
        $region43: #{tpu_custom_call.1} parent=31 // pred_region
          %s530 = sand.u32 %s25, 1
          %s531 = scalar_lea.sflag [#allocation4], %s530
          %s532 = sand.u32 %s129, 1
          %s533 = smul.addr %s532, 192
          %s534 = scalar_lea.vmem [#allocation10], %s533
          %s536 = ssub.s32 3072, 3072
          %537 = vsyncadd %s531, %s536
          %s538 = smul.addr %s25, 48
          %s539 = smul.addr %s538, 64
          %s540 = scalar_lea.hbm %s4, %s539
          %s541 = sshll.u32 %s534, 4
          %s542 = int_to_ptr.vmem [resolvable:$true] %s541
          %547 = dma.hbm_to_vmem [thread:$0]  %s540, 3072, %s542, %s531, 192, 192, 12
        $region44: #{tpu_custom_call.1} parent=31 // pred_fallthru
          _
        // Predicated region
        $region45: #{tpu_custom_call.1} parent=31 // pred_check
          %p548 = pneg %p165
        $region46: #{tpu_custom_call.1} parent=31 // pred_check_branch
          %550 = sbr.rel (%p548) target = $region48
        $region47: #{tpu_custom_call.1} parent=31 // pred_region
          %p551 = scmp.lt.s32.totalorder %s25, 1
          %s552 = scalar_select %p551, %s25, 1
          %s553 = smul.addr %s552, 3
          %s554 = scalar_lea.vmem %s5, %s553
        $region48: #{tpu_custom_call.1} parent=31 // pred_fallthru
          _
        // Predicated region
        $region49: #{tpu_custom_call.1} parent=31 // pred_check
          %p555 = pneg %p191
        $region50: #{tpu_custom_call.1} parent=31 // pred_check_branch
          %557 = sbr.rel (%p555) target = $region52
        $region51: #{tpu_custom_call.1} parent=31 // pred_region
          %s558 = sand.u32 %s25, 1
          %s559 = scalar_lea.sflag [#allocation4], %s558
          %s560 = sand.u32 %s181, 1
          %s561 = smul.addr %s560, 64
          %s562 = scalar_lea.vmem [#allocation11], %s561
          %s564 = ssub.s32 1024, 1024
          %565 = vsyncadd %s559, %s564
          %s566 = smul.addr %s25, 16
          %s567 = smul.addr %s566, 64
          %s568 = scalar_lea.hbm %s6, %s567
          %s569 = sshll.u32 %s562, 4
          %s570 = int_to_ptr.vmem [resolvable:$true] %s569
          %575 = dma.hbm_to_vmem [thread:$0]  %s568, 1024, %s570, %s559, 64, 64, 4
        $region52: #{tpu_custom_call.1} parent=31 // pred_fallthru
          _
        // Predicated region
        $region53: #{tpu_custom_call.1} parent=31 // pred_check
          %p576 = pneg %p217
        $region54: #{tpu_custom_call.1} parent=31 // pred_check_branch
          %578 = sbr.rel (%p576) target = $region56
        $region55: #{tpu_custom_call.1} parent=31 // pred_region
          %p579 = scmp.lt.s32.totalorder %s25, 1
          %s580 = scalar_select %p579, %s25, 1
          %s581 = scalar_lea.vmem %s7, %s580
        $region56: #{tpu_custom_call.1} parent=31 // pred_fallthru
          _
        // Predicated region
        $region57: #{tpu_custom_call.1} parent=31 // pred_check
          %p582 = pneg %p243
        $region58: #{tpu_custom_call.1} parent=31 // pred_check_branch
          %584 = sbr.rel (%p582) target = $region60
        $region59: #{tpu_custom_call.1} parent=31 // pred_region
          %p585 = scmp.lt.s32.totalorder %s25, 1
          %s586 = scalar_select %p585, %s25, 1
          %s587 = scalar_lea.vmem %s8, %s586
        $region60: #{tpu_custom_call.1} parent=31 // pred_fallthru
          _
        // Predicated region
        $region61: #{tpu_custom_call.1} parent=31 // pred_check
          %p588 = pneg %p269
        $region62: #{tpu_custom_call.1} parent=31 // pred_check_branch
          %590 = sbr.rel (%p588) target = $region64
        $region63: #{tpu_custom_call.1} parent=31 // pred_region
          %p591 = scmp.lt.s32.totalorder %s25, 1
          %s592 = scalar_select %p591, %s25, 1
          %s593 = scalar_lea.vmem %s9, %s592
        $region64: #{tpu_custom_call.1} parent=31 // pred_fallthru
          _
        // Predicated region
        $region65: #{tpu_custom_call.1} parent=31 // pred_check
          %p594 = pneg %p295
        $region66: #{tpu_custom_call.1} parent=31 // pred_check_branch
          %596 = sbr.rel (%p594) target = $region68
        $region67: #{tpu_custom_call.1} parent=31 // pred_region
          %s597 = sand.u32 %s25, 1
          %s598 = scalar_lea.sflag [#allocation4], %s597
          %s599 = sand.u32 %s285, 1
          %s600 = smul.addr %s599, 128
          %s601 = scalar_lea.vmem [#allocation12], %s600
          %s603 = ssub.s32 2048, 2048
          %604 = vsyncadd %s598, %s603
          %s605 = smul.addr %s25, 32
          %s606 = smul.addr %s605, 64
          %s607 = scalar_lea.hbm %s10, %s606
          %s608 = sshll.u32 %s601, 4
          %s609 = int_to_ptr.vmem [resolvable:$true] %s608
          %614 = dma.hbm_to_vmem [thread:$0]  %s607, 2048, %s609, %s598, 128, 128, 8
        $region68: #{tpu_custom_call.1} parent=31 // pred_fallthru
          _
        // Predicated region
        $region69: #{tpu_custom_call.1} parent=31 // pred_check
          %p615 = pneg %p321
        $region70: #{tpu_custom_call.1} parent=31 // pred_check_branch
          %617 = sbr.rel (%p615) target = $region72
        $region71: #{tpu_custom_call.1} parent=31 // pred_region
          %p618 = scmp.lt.s32.totalorder %s25, 1
          %s619 = scalar_select %p618, %s25, 1
          %s620 = smul.addr %s619, 2
          %s621 = scalar_lea.vmem %s11, %s620
        $region72: #{tpu_custom_call.1} parent=31 // pred_fallthru
          _
        // Predicated region
        $region73: #{tpu_custom_call.1} parent=31 // pred_check
          %p622 = pneg %p347
        $region74: #{tpu_custom_call.1} parent=31 // pred_check_branch
          %624 = sbr.rel (%p622) target = $region76
        $region75: #{tpu_custom_call.1} parent=31 // pred_region
          %s625 = sand.u32 %s25, 1
          %s626 = scalar_lea.sflag [#allocation4], %s625
          %s627 = sand.u32 %s337, 1
          %s628 = smul.addr %s627, 128
          %s629 = scalar_lea.vmem [#allocation13], %s628
          %s631 = ssub.s32 2048, 2048
          %632 = vsyncadd %s626, %s631
          %s633 = smul.addr %s25, 32
          %s634 = smul.addr %s633, 64
          %s635 = scalar_lea.hbm %s12, %s634
          %s636 = sshll.u32 %s629, 4
          %s637 = int_to_ptr.vmem [resolvable:$true] %s636
          %642 = dma.hbm_to_vmem [thread:$0]  %s635, 2048, %s637, %s626, 64, 64, 4
        $region76: #{tpu_custom_call.1} parent=31 // pred_fallthru
          _
        // Predicated region
        $region77: #{tpu_custom_call.1} parent=31 // pred_check
          %p643 = pneg %p373
        $region78: #{tpu_custom_call.1} parent=31 // pred_check_branch
          %645 = sbr.rel (%p643) target = $region80
        $region79: #{tpu_custom_call.1} parent=31 // pred_region
          %p646 = scmp.lt.s32.totalorder %s25, 1
          %s647 = scalar_select %p646, %s25, 1
          %s648 = scalar_lea.vmem %s13, %s647
        $region80: #{tpu_custom_call.1} parent=31 // pred_fallthru
          _
      $region32: #{tpu_custom_call.1} parent=5 // pred_fallthru
        _
      %p649 = scmp.le.s32.totalorder 1, %s25
      %p650 = scmp.lt.s32.totalorder %s25, 3
      %p651 = pnand %p649, %p650
      %p652 = pneg %p651
      // Predicated region
      $region81: #{tpu_custom_call.1} parent=5 // pred_check
        _
      $region82: #{tpu_custom_call.1} parent=5 // pred_check_branch
        %654 = sbr.rel (%p651) target = $region84
      $region83: #{tpu_custom_call.1} parent=5 // pred_region
        %s655 = ssub.s32 %s25, 1
        // Predicated region
        $region85: #{tpu_custom_call.1} parent=83 // pred_check
          %p656 = pneg %p46
        $region86: #{tpu_custom_call.1} parent=83 // pred_check_branch
          %658 = sbr.rel (%p656) target = $region88
        $region87: #{tpu_custom_call.1} parent=83 // pred_region
          %659 = dma.done [#allocation4], 256
        $region88: #{tpu_custom_call.1} parent=83 // pred_fallthru
          _
        // Predicated region
        $region89: #{tpu_custom_call.1} parent=83 // pred_check
          %p660 = pneg %p67
        $region90: #{tpu_custom_call.1} parent=83 // pred_check_branch
          %662 = sbr.rel (%p660) target = $region92
        $region91: #{tpu_custom_call.1} parent=83 // pred_region
          %663 = dma.done [#allocation7], 256
        $region92: #{tpu_custom_call.1} parent=83 // pred_fallthru
          _
        %s664 = sand.u32 %s30, 1
        %s665 = scalar_lea.sflag [#allocation4], %s664
        %s666 = sand.u32 %s80, 1
        %s667 = scalar_lea.vmem [#allocation8], %s666
        // Predicated region
        $region93: #{tpu_custom_call.1} parent=83 // pred_check
          %p668 = pneg %p93
        $region94: #{tpu_custom_call.1} parent=83 // pred_check_branch
          %670 = sbr.rel (%p668) target = $region96
        $region95: #{tpu_custom_call.1} parent=83 // pred_region
          %671 = dma.done %s665, 16
        $region96: #{tpu_custom_call.1} parent=83 // pred_fallthru
          _
        %s672 = sand.u32 %s30, 1
        %s673 = scalar_lea.sflag [#allocation4], %s672
        %s674 = sand.u32 %s106, 1
        %s675 = scalar_lea.vmem [#allocation9], %s674
        // Predicated region
        $region97: #{tpu_custom_call.1} parent=83 // pred_check
          %p676 = pneg %p119
        $region98: #{tpu_custom_call.1} parent=83 // pred_check_branch
          %678 = sbr.rel (%p676) target = $region100
        $region99: #{tpu_custom_call.1} parent=83 // pred_region
          %679 = dma.done %s673, 16
        $region100: #{tpu_custom_call.1} parent=83 // pred_fallthru
          _
        %s680 = sand.u32 %s30, 1
        %s681 = scalar_lea.sflag [#allocation4], %s680
        %s682 = sand.u32 %s132, 1
        %s683 = smul.addr %s682, 192
        %s684 = scalar_lea.vmem [#allocation10], %s683
        // Predicated region
        $region101: #{tpu_custom_call.1} parent=83 // pred_check
          %p685 = pneg %p145
        $region102: #{tpu_custom_call.1} parent=83 // pred_check_branch
          %687 = sbr.rel (%p685) target = $region104
        $region103: #{tpu_custom_call.1} parent=83 // pred_region
          %688 = dma.done %s681, 3072
        $region104: #{tpu_custom_call.1} parent=83 // pred_fallthru
          _
        %s689 = sand.u32 %s30, 1
        %s690 = scalar_lea.sflag [#allocation4], %s689
        %s691 = sand.u32 %s184, 1
        %s692 = smul.addr %s691, 64
        %s693 = scalar_lea.vmem [#allocation11], %s692
        // Predicated region
        $region105: #{tpu_custom_call.1} parent=83 // pred_check
          %p694 = pneg %p197
        $region106: #{tpu_custom_call.1} parent=83 // pred_check_branch
          %696 = sbr.rel (%p694) target = $region108
        $region107: #{tpu_custom_call.1} parent=83 // pred_region
          %697 = dma.done %s690, 1024
        $region108: #{tpu_custom_call.1} parent=83 // pred_fallthru
          _
        %s698 = sand.u32 %s30, 1
        %s699 = scalar_lea.sflag [#allocation4], %s698
        %s700 = sand.u32 %s288, 1
        %s701 = smul.addr %s700, 128
        %s702 = scalar_lea.vmem [#allocation12], %s701
        // Predicated region
        $region109: #{tpu_custom_call.1} parent=83 // pred_check
          %p703 = pneg %p301
        $region110: #{tpu_custom_call.1} parent=83 // pred_check_branch
          %705 = sbr.rel (%p703) target = $region112
        $region111: #{tpu_custom_call.1} parent=83 // pred_region
          %706 = dma.done %s699, 2048
        $region112: #{tpu_custom_call.1} parent=83 // pred_fallthru
          _
        %s707 = sand.u32 %s30, 1
        %s708 = scalar_lea.sflag [#allocation4], %s707
        %s709 = sand.u32 %s340, 1
        %s710 = smul.addr %s709, 128
        %s711 = scalar_lea.vmem [#allocation13], %s710
        // Predicated region
        $region113: #{tpu_custom_call.1} parent=83 // pred_check
          %p712 = pneg %p353
        $region114: #{tpu_custom_call.1} parent=83 // pred_check_branch
          %714 = sbr.rel (%p712) target = $region116
        $region115: #{tpu_custom_call.1} parent=83 // pred_region
          %715 = dma.done %s708, 2048
        $region116: #{tpu_custom_call.1} parent=83 // pred_fallthru
          _
        %p716 = pneg %p46
        %p717 = pneg %p43
        %p718 = pneg %p67
        %p719 = pneg %p64
        %s720 = sand.u32 %s30, 1
        %s721 = scalar_lea.sflag [#allocation4], %s720
        %s722 = sand.u32 %s80, 1
        %s723 = scalar_lea.vmem [#allocation8], %s722
        %p724 = pneg %p93
        %p725 = pneg %p90
        %s726 = sand.u32 %s30, 1
        %s727 = scalar_lea.sflag [#allocation4], %s726
        %s728 = sand.u32 %s106, 1
        %s729 = scalar_lea.vmem [#allocation9], %s728
        %p730 = pneg %p119
        %p731 = pneg %p116
        %s732 = sand.u32 %s30, 1
        %s733 = scalar_lea.sflag [#allocation4], %s732
        %s734 = sand.u32 %s132, 1
        %s735 = smul.addr %s734, 192
        %s736 = scalar_lea.vmem [#allocation10], %s735
        %p737 = pneg %p145
        %p738 = pneg %p142
        %p739 = scmp.lt.s32.totalorder %s30, 1
        %s740 = scalar_select %p739, %s30, 1
        %s741 = smul.addr %s740, 3
        %s742 = scalar_lea.vmem %s5, %s741
        %p743 = pneg %p171
        %p744 = pneg %p168
        %s745 = sand.u32 %s30, 1
        %s746 = scalar_lea.sflag [#allocation4], %s745
        %s747 = sand.u32 %s184, 1
        %s748 = smul.addr %s747, 64
        %s749 = scalar_lea.vmem [#allocation11], %s748
        %p750 = pneg %p197
        %p751 = pneg %p194
        %p752 = scmp.lt.s32.totalorder %s30, 1
        %s753 = scalar_select %p752, %s30, 1
        %s754 = scalar_lea.vmem %s7, %s753
        %p755 = pneg %p223
        %p756 = pneg %p220
        %p757 = scmp.lt.s32.totalorder %s30, 1
        %s758 = scalar_select %p757, %s30, 1
        %s759 = scalar_lea.vmem %s8, %s758
        %p760 = pneg %p249
        %p761 = pneg %p246
        %p762 = scmp.lt.s32.totalorder %s30, 1
        %s763 = scalar_select %p762, %s30, 1
        %s764 = scalar_lea.vmem %s9, %s763
        %p765 = pneg %p275
        %p766 = pneg %p272
        %s767 = sand.u32 %s30, 1
        %s768 = scalar_lea.sflag [#allocation4], %s767
        %s769 = sand.u32 %s288, 1
        %s770 = smul.addr %s769, 128
        %s771 = scalar_lea.vmem [#allocation12], %s770
        %p772 = pneg %p301
        %p773 = pneg %p298
        %p774 = scmp.lt.s32.totalorder %s30, 1
        %s775 = scalar_select %p774, %s30, 1
        %s776 = smul.addr %s775, 2
        %s777 = scalar_lea.vmem %s11, %s776
        %p778 = pneg %p327
        %p779 = pneg %p324
        %s780 = sand.u32 %s30, 1
        %s781 = scalar_lea.sflag [#allocation4], %s780
        %s782 = sand.u32 %s340, 1
        %s783 = smul.addr %s782, 128
        %s784 = scalar_lea.vmem [#allocation13], %s783
        %p785 = pneg %p353
        %p786 = pneg %p350
        %p787 = scmp.lt.s32.totalorder %s30, 1
        %s788 = scalar_select %p787, %s30, 1
        %s789 = scalar_lea.vmem %s13, %s788
        %p790 = pneg %p379
        %p791 = pneg %p376
        %p792 = pneg %p400
        %p793 = pneg %p397
        %p794 = pneg %p421
        %p795 = pneg %p418
        %p796 = pneg %p442
        %p797 = pneg %p439
        %p798 = scmp.lt.s32.totalorder %s30, 1
        %s799 = scalar_select %p798, %s30, 1
        %s800 = smul.addr %s799, 3
        %s801 = scalar_lea.vmem %s5, %s800
        %p802 = scmp.lt.s32.totalorder %s30, 1
        %s803 = scalar_select %p802, %s30, 1
        %s804 = scalar_lea.vmem %s7, %s803
        %p805 = scmp.lt.s32.totalorder %s30, 1
        %s806 = scalar_select %p805, %s30, 1
        %s807 = scalar_lea.vmem %s8, %s806
        %p808 = scmp.lt.s32.totalorder %s30, 1
        %s809 = scalar_select %p808, %s30, 1
        %s810 = scalar_lea.vmem %s9, %s809
        %p811 = scmp.lt.s32.totalorder %s30, 1
        %s812 = scalar_select %p811, %s30, 1
        %s813 = smul.addr %s812, 2
        %s814 = scalar_lea.vmem %s11, %s813
        %p815 = scmp.lt.s32.totalorder %s30, 1
        %s816 = scalar_select %p815, %s30, 1
        %s817 = scalar_lea.vmem %s13, %s816
        %p819 = scmp.eq.s32.totalorder %s30, 0
        // Predicated region
        $region117: #{tpu_custom_call.1} parent=83 // pred_check
          %p820 = pneg %p819
        $region118: #{tpu_custom_call.1} parent=83 // pred_check_branch
          %822 = sbr.rel (%p820) target = $region120
        $region119: #{tpu_custom_call.1} parent=83 // pred_region
          %v823 = vld [vmem:[#allocation3] sm:$0xff]
          %v824 = vld [vmem:[#allocation3 + $0x8] sm:$0xff]
          %825 = vst [vmem:[#allocation2] sm:$0xff] %v823
          %826 = vst [vmem:[#allocation2 + $0x8] sm:$0xff] %v824
        $region120: #{tpu_custom_call.1} parent=83 // pred_fallthru
          _
        %v827 = vld [vmem:[#allocation2] sm:$0xff]
        %v828 = vld [vmem:[#allocation2 + $0x8] sm:$0xff]
        %v829 = vld [vmem:[#allocation6] sm:$0xff]
        %v830 = vld [vmem:[#allocation6 + $0x8] sm:$0xff]
        %v831 = vld [vmem:[%s667] sm:$0x1]
        %v832 = vld [vmem:[%s675] sm:$0x1]
        %833 = vadd.xlane.f32.xlu0 %v827
        %v834 = vpop.xlane.xlu0 %833
        %835 = vadd.xlane.f32.xlu0 %v828
        %v836 = vpop.xlane.xlu0 %835
        %v837 = vrcp.pop 128.0
        %v838 = vmul.f32 %v834, %v837
        %v839 = vmul.f32 %v836, %v837
        %v840 = vsub.f32 %v827, %v838
        %v841 = vsub.f32 %v828, %v839
        %v842 = vmul.f32 %v840, %v840
        %v843 = vmul.f32 %v841, %v841
        %844 = vadd.xlane.f32.xlu0 %v842
        %v845 = vpop.xlane.xlu0 %844
        %846 = vadd.xlane.f32.xlu0 %v843
        %v847 = vpop.xlane.xlu0 %846
        %v848 = vmul.f32 %v845, %v837
        %v849 = vmul.f32 %v847, %v837
        %v850 = vadd.f32 %v848, 1e-05
        %v851 = vadd.f32 %v849, 1e-05
        %v852 = vrsqrt.pop %v850
        %v853 = vrsqrt.pop %v851
        %v854 = vmul.f32 %v840, %v852
        %v855 = vmul.f32 %v841, %v853
        %v857 = vlaneseq
        %v858 = vshrl.u32 %v857, 7
        %v859 = vsub.s32 0, %v858
        %v860 = vrot.slane %v831, %v859
        %v862 = vmul.f32 %v854, %v860
        %v863 = vmul.f32 %v855, %v860
        %v865 = vlaneseq
        %v866 = vshrl.u32 %v865, 7
        %v867 = vsub.s32 0, %v866
        %v868 = vrot.slane %v832, %v867
        %v870 = vadd.f32 %v862, %v868
        %v871 = vadd.f32 %v863, %v868
        %v872 = vpack.c.bf16 %v871, %v870
        %v873 = vld [vmem:[%s684] sm:$0xff]
        %v874 = vld [vmem:[%s684 + $0x8] sm:$0xf]
        %v875 = vld [vmem:[%s684 + $0xc] sm:$0xff]
        %v876 = vld [vmem:[%s684 + $0x14] sm:$0xf]
        %v877 = vld [vmem:[%s684 + $0x18] sm:$0xff]
        %v878 = vld [vmem:[%s684 + $0x20] sm:$0xf]
        %v879 = vld [vmem:[%s684 + $0x24] sm:$0xff]
        %v880 = vld [vmem:[%s684 + $0x2c] sm:$0xf]
        %v881 = vld [vmem:[%s684 + $0x30] sm:$0xff]
        %v882 = vld [vmem:[%s684 + $0x38] sm:$0xf]
        %v883 = vld [vmem:[%s684 + $0x3c] sm:$0xff]
        %v884 = vld [vmem:[%s684 + $0x44] sm:$0xf]
        %v885 = vld [vmem:[%s684 + $0x48] sm:$0xff]
        %v886 = vld [vmem:[%s684 + $0x50] sm:$0xf]
        %v887 = vld [vmem:[%s684 + $0x54] sm:$0xff]
        %v888 = vld [vmem:[%s684 + $0x5c] sm:$0xf]
        %v889 = vld [vmem:[%s684 + $0x60] sm:$0xff]
        %v890 = vld [vmem:[%s684 + $0x68] sm:$0xf]
        %v891 = vld [vmem:[%s684 + $0x6c] sm:$0xff]
        %v892 = vld [vmem:[%s684 + $0x74] sm:$0xf]
        %v893 = vld [vmem:[%s684 + $0x78] sm:$0xff]
        %v894 = vld [vmem:[%s684 + $0x80] sm:$0xf]
        %v895 = vld [vmem:[%s684 + $0x84] sm:$0xff]
        %v896 = vld [vmem:[%s684 + $0x8c] sm:$0xf]
        %v897 = vld [vmem:[%s684 + $0x90] sm:$0xff]
        %v898 = vld [vmem:[%s684 + $0x98] sm:$0xf]
        %v899 = vld [vmem:[%s684 + $0x9c] sm:$0xff]
        %v900 = vld [vmem:[%s684 + $0xa4] sm:$0xf]
        %v901 = vld [vmem:[%s684 + $0xa8] sm:$0xff]
        %v902 = vld [vmem:[%s684 + $0xb0] sm:$0xf]
        %v903 = vld [vmem:[%s684 + $0xb4] sm:$0xff]
        %v904 = vld [vmem:[%s684 + $0xbc] sm:$0xf]
        %v905 = vld [vmem:[%s801] sm:$0x7]
        %v907 = vlaneseq
        %v908 = vshrl.u32 %v907, 7
        %v909 = vsub.s32 0, %v908
        %v910 = vrot.slane %v905, %v909
        %v911 = vlaneseq
        %v912 = vshrl.u32 %v911, 7
        %v913 = vsub.s32 1, %v912
        %v914 = vrot.slane %v905, %v913
        %v915 = vlaneseq
        %v916 = vshrl.u32 %v915, 7
        %v917 = vsub.s32 2, %v916
        %v918 = vrot.slane %v905, %v917
        %v954 = vunpack.c.l.b16 %v873
        %v955 = vunpack.c.h.b16 %v873
        %v956 = vunpack.c.l.b16 %v874
        %v957 = vunpack.c.l.b16 %v875
        %v958 = vunpack.c.h.b16 %v875
        %v959 = vunpack.c.l.b16 %v876
        %v960 = vunpack.c.l.b16 %v877
        %v961 = vunpack.c.h.b16 %v877
        %v962 = vunpack.c.l.b16 %v878
        %v963 = vunpack.c.l.b16 %v879
        %v964 = vunpack.c.h.b16 %v879
        %v965 = vunpack.c.l.b16 %v880
        %v966 = vunpack.c.l.b16 %v881
        %v967 = vunpack.c.h.b16 %v881
        %v968 = vunpack.c.l.b16 %v882
        %v969 = vunpack.c.l.b16 %v883
        %v970 = vunpack.c.h.b16 %v883
        %v971 = vunpack.c.l.b16 %v884
        %v972 = vunpack.c.l.b16 %v885
        %v973 = vunpack.c.h.b16 %v885
        %v974 = vunpack.c.l.b16 %v886
        %v975 = vunpack.c.l.b16 %v887
        %v976 = vunpack.c.h.b16 %v887
        %v977 = vunpack.c.l.b16 %v888
        %v978 = vunpack.c.l.b16 %v889
        %v979 = vunpack.c.h.b16 %v889
        %v980 = vunpack.c.l.b16 %v890
        %v981 = vunpack.c.l.b16 %v891
        %v982 = vunpack.c.h.b16 %v891
        %v983 = vunpack.c.l.b16 %v892
        %v984 = vunpack.c.l.b16 %v893
        %v985 = vunpack.c.h.b16 %v893
        %v986 = vunpack.c.l.b16 %v894
        %v987 = vunpack.c.l.b16 %v895
        %v988 = vunpack.c.h.b16 %v895
        %v989 = vunpack.c.l.b16 %v896
        %v990 = vunpack.c.l.b16 %v897
        %v991 = vunpack.c.h.b16 %v897
        %v992 = vunpack.c.l.b16 %v898
        %v993 = vunpack.c.l.b16 %v899
        %v994 = vunpack.c.h.b16 %v899
        %v995 = vunpack.c.l.b16 %v900
        %v996 = vunpack.c.l.b16 %v901
        %v997 = vunpack.c.h.b16 %v901
        %v998 = vunpack.c.l.b16 %v902
        %v999 = vunpack.c.l.b16 %v903
        %v1000 = vunpack.c.h.b16 %v903
        %v1001 = vunpack.c.l.b16 %v904
        %v1002 = vpack.c.b16 %v957, %v954
        %v1003 = vpack.c.b16 %v958, %v955
        %v1004 = vpack.c.b16 %v959, %v956
        %v1005 = vpack.c.b16 %v963, %v960
        %v1006 = vpack.c.b16 %v964, %v961
        %v1007 = vpack.c.b16 %v965, %v962
        %v1008 = vpack.c.b16 %v969, %v966
        %v1009 = vpack.c.b16 %v970, %v967
        %v1010 = vpack.c.b16 %v971, %v968
        %v1011 = vpack.c.b16 %v975, %v972
        %v1012 = vpack.c.b16 %v976, %v973
        %v1013 = vpack.c.b16 %v977, %v974
        %v1014 = vpack.c.b16 %v981, %v978
        %v1015 = vpack.c.b16 %v982, %v979
        %v1016 = vpack.c.b16 %v983, %v980
        %v1017 = vpack.c.b16 %v987, %v984
        %v1018 = vpack.c.b16 %v988, %v985
        %v1019 = vpack.c.b16 %v989, %v986
        %v1020 = vpack.c.b16 %v993, %v990
        %v1021 = vpack.c.b16 %v994, %v991
        %v1022 = vpack.c.b16 %v995, %v992
        %v1023 = vpack.c.b16 %v999, %v996
        %v1024 = vpack.c.b16 %v1000, %v997
        %v1025 = vpack.c.b16 %v1001, %v998
        %1050 = vmatprep.subr.bf16.mxu0 %v1003
        %1051 = vmatpush1.bf16.msra.mxu0 %v1002
        %1052 = vmatprep.subr.bf16.mxu0 %v1006
        %1053 = vmatpush1.bf16.msra.mxu0 %v1005
        %1054 = vmatprep.subr.bf16.mxu0 %v1009
        %1055 = vmatpush1.bf16.msra.mxu0 %v1008
        %1056 = vmatprep.subr.bf16.mxu0 %v1012
        %1057 = vmatpush1.bf16.msra.mxu0 %v1011
        %1058 = vmatprep.subr.bf16.mxu0 %v1015
        %1059 = vmatpush1.bf16.msra.mxu0 %v1014
        %1060 = vmatprep.subr.bf16.mxu0 %v1018
        %1061 = vmatpush1.bf16.msra.mxu0 %v1017
        %1062 = vmatprep.subr.bf16.mxu0 %v1021
        %1063 = vmatpush1.bf16.msra.mxu0 %v1020
        %1064 = vmatprep.subr.bf16.mxu0 %v1024
        %1065 = vmatpush1.bf16.msra.mxu0 %v1023
        %1066 = vmatprep.subr.bf16.mxu0 0
        %1067 = vmatpush1.bf16.msra.mxu0 0
        %1068 = vmatprep.subr.bf16.mxu0 0
        %1069 = vmatpush1.bf16.msra.mxu0 0
        %1070 = vmatprep.subr.bf16.mxu0 0
        %1071 = vmatpush1.bf16.msra.mxu0 0
        %1072 = vmatprep.subr.bf16.mxu0 0
        %1073 = vmatpush1.bf16.msra.mxu0 0
        %1074 = vmatprep.subr.bf16.mxu0 0
        %1075 = vmatpush1.bf16.msra.mxu0 0
        %1076 = vmatprep.subr.bf16.mxu0 0
        %1077 = vmatpush1.bf16.msra.mxu0 0
        %1078 = vmatprep.subr.bf16.mxu0 0
        %1079 = vmatpush1.bf16.msra.mxu0 0
        %1080 = vmatprep.subr.bf16.mxu0 0
        %1081 = vmatpush1.bf16.msra.mxu0 0
        %1082 = vmatprep.mubr.bf16.mxu0 0
        %1083 = vmatmul.mubr.bf16.gmra.mrb[0].mxu0 %v872
        %v1084 = vpop.f32.mrb[0].mxu0
        %v1085 = vadd.f32 %v910, %v1084
        %v1086 = vpop.f32.mrb[0].mxu0
        %v1087 = vadd.f32 %v914, %v1086
        %v1088 = vpop.f32.mrb[0].mxu0
        %v1089 = vadd.f32 %v910, %v1088
        %v1090 = vpop.f32.mrb[0].mxu0
        %v1091 = vadd.f32 %v914, %v1090
        %1092 = vdwg.mxu0
        %1093 = vmatprep.subr.bf16.mxu0 0
        %1094 = vmatpush1.bf16.msra.mxu0 %v1004
        %1095 = vmatprep.subr.bf16.mxu0 0
        %1096 = vmatpush1.bf16.msra.mxu0 %v1007
        %1097 = vmatprep.subr.bf16.mxu0 0
        %1098 = vmatpush1.bf16.msra.mxu0 %v1010
        %1099 = vmatprep.subr.bf16.mxu0 0
        %1100 = vmatpush1.bf16.msra.mxu0 %v1013
        %1101 = vmatprep.subr.bf16.mxu0 0
        %1102 = vmatpush1.bf16.msra.mxu0 %v1016
        %1103 = vmatprep.subr.bf16.mxu0 0
        %1104 = vmatpush1.bf16.msra.mxu0 %v1019
        %1105 = vmatprep.subr.bf16.mxu0 0
        %1106 = vmatpush1.bf16.msra.mxu0 %v1022
        %1107 = vmatprep.subr.bf16.mxu0 0
        %1108 = vmatpush1.bf16.msra.mxu0 %v1025
        %1109 = vmatprep.subr.bf16.mxu0 0
        %1110 = vmatpush1.bf16.msra.mxu0 0
        %1111 = vmatprep.subr.bf16.mxu0 0
        %1112 = vmatpush1.bf16.msra.mxu0 0
        %1113 = vmatprep.subr.bf16.mxu0 0
        %1114 = vmatpush1.bf16.msra.mxu0 0
        %1115 = vmatprep.subr.bf16.mxu0 0
        %1116 = vmatpush1.bf16.msra.mxu0 0
        %1117 = vmatprep.subr.bf16.mxu0 0
        %1118 = vmatpush1.bf16.msra.mxu0 0
        %1119 = vmatprep.subr.bf16.mxu0 0
        %1120 = vmatpush1.bf16.msra.mxu0 0
        %1121 = vmatprep.subr.bf16.mxu0 0
        %1122 = vmatpush1.bf16.msra.mxu0 0
        %1123 = vmatprep.subr.bf16.mxu0 0
        %1124 = vmatpush1.bf16.msra.mxu0 0
        %1125 = vmatprep.mubr.bf16.mxu0 0
        %1126 = vmatmul.mubr.bf16.gmra.mrb[0].mxu0 %v872
        %v1127 = vpop.f32.mrb[0].mxu0
        %v1128 = vadd.f32 %v918, %v1127
        %v1129 = vpop.f32.mrb[0].mxu0
        %v1130 = vpop.f32.mrb[0].mxu0
        %v1131 = vadd.f32 %v918, %v1130
        %v1132 = vpop.f32.mrb[0].mxu0
        %1133 = vdwg.mxu0
        %v1134 = vpack.c.bf16 %v1089, %v1085
        %v1135 = vpack.c.bf16 %v1091, %v1087
        %v1136 = vpack.c.bf16 %v1131, %v1128
        %v1137 = vld [vmem:[%s693] sm:$0xf]
        %v1138 = vld [vmem:[%s693 + $0x4] sm:$0xf]
        %v1139 = vld [vmem:[%s693 + $0x8] sm:$0xf]
        %v1140 = vld [vmem:[%s693 + $0xc] sm:$0xf]
        %v1141 = vld [vmem:[%s693 + $0x10] sm:$0xf]
        %v1142 = vld [vmem:[%s693 + $0x14] sm:$0xf]
        %v1143 = vld [vmem:[%s693 + $0x18] sm:$0xf]
        %v1144 = vld [vmem:[%s693 + $0x1c] sm:$0xf]
        %v1145 = vld [vmem:[%s693 + $0x20] sm:$0xf]
        %v1146 = vld [vmem:[%s693 + $0x24] sm:$0xf]
        %v1147 = vld [vmem:[%s693 + $0x28] sm:$0xf]
        %v1148 = vld [vmem:[%s693 + $0x2c] sm:$0xf]
        %v1149 = vld [vmem:[%s693 + $0x30] sm:$0xf]
        %v1150 = vld [vmem:[%s693 + $0x34] sm:$0xf]
        %v1151 = vld [vmem:[%s693 + $0x38] sm:$0xf]
        %v1152 = vld [vmem:[%s693 + $0x3c] sm:$0xf]
        %vm1153 = vcmask 261120
        %v1155 = vsel %vm1153, %v1134, 0
        %v1158 = vsel %vm1153, %v1135, 0
        %1160 = vmatprep.subr.bf16.mxu0 0
        %1161 = vmatpush1.bf16.xpose.msra.mxu0 %v1158
        %1162 = vmatprep.subr.bf16.mxu0 0
        %1163 = vmatpush1.bf16.xpose.msra.mxu0 0
        %1164 = vmatprep.subr.bf16.mxu0 0
        %1165 = vmatpush1.bf16.xpose.msra.mxu0 0
        %1166 = vmatprep.subr.bf16.mxu0 0
        %1167 = vmatpush1.bf16.xpose.msra.mxu0 0
        %1168 = vmatprep.subr.bf16.mxu0 0
        %1169 = vmatpush1.bf16.xpose.msra.mxu0 0
        %1170 = vmatprep.subr.bf16.mxu0 0
        %1171 = vmatpush1.bf16.xpose.msra.mxu0 0
        %1172 = vmatprep.subr.bf16.mxu0 0
        %1173 = vmatpush1.bf16.xpose.msra.mxu0 0
        %1174 = vmatprep.subr.bf16.mxu0 0
        %1175 = vmatpush1.bf16.xpose.msra.mxu0 0
        %1176 = vmatprep.subr.bf16.mxu0 0
        %1177 = vmatpush1.bf16.xpose.msra.mxu0 0
        %1178 = vmatprep.subr.bf16.mxu0 0
        %1179 = vmatpush1.bf16.xpose.msra.mxu0 0
        %1180 = vmatprep.subr.bf16.mxu0 0
        %1181 = vmatpush1.bf16.xpose.msra.mxu0 0
        %1182 = vmatprep.subr.bf16.mxu0 0
        %1183 = vmatpush1.bf16.xpose.msra.mxu0 0
        %1184 = vmatprep.subr.bf16.mxu0 0
        %1185 = vmatpush1.bf16.xpose.msra.mxu0 0
        %1186 = vmatprep.subr.bf16.mxu0 0
        %1187 = vmatpush1.bf16.xpose.msra.mxu0 0
        %1188 = vmatprep.subr.bf16.mxu0 0
        %1189 = vmatpush1.bf16.xpose.msra.mxu0 0
        %1190 = vmatprep.subr.bf16.mxu0 0
        %1191 = vmatpush1.bf16.xpose.msra.mxu0 0
        %1192 = vmatprep.mubr.bf16.mxu0 0
        %1193 = vmatmul.mubr.bf16.gmra.mrb[0].mxu0 %v1155
        %v1194 = vpop.f32.mrb[0].mxu0
        %v1195 = vadd.f32 %v829, %v1194
        %v1196 = vpop.f32.mrb[0].mxu0
        %v1197 = vpop.f32.mrb[0].mxu0
        %v1198 = vadd.f32 %v830, %v1197
        %v1199 = vpop.f32.mrb[0].mxu0
        %1200 = vdwg.mxu0
        %vm1201 = vcmask 130048
        %v1202 = vsel %vm1201, %v1195, -inf
        %1203 = vmax.xlane.f32.xlu0 %v1202
        %v1204 = vpop.xlane.xlu0 %1203
        %v1205 = vsel %vm1201, %v1198, -inf
        %1206 = vmax.xlane.f32.xlu0 %v1205
        %v1207 = vpop.xlane.xlu0 %1206
        %v1208 = vsub.f32 %v1195, %v1204
        %v1209 = vsub.f32 %v1198, %v1207
        %v1210 = vmul.f32 %v1208, 1.442695
        %v1211 = vpow.pop %v1210
        %v1212 = vmul.f32 %v1209, 1.442695
        %v1213 = vpow.pop %v1212
        %v1214 = vsel %vm1201, %v1211, 0.0
        %1215 = vadd.xlane.f32.xlu0 %v1214
        %v1216 = vpop.xlane.xlu0 %1215
        %v1217 = vsel %vm1201, %v1213, 0.0
        %1218 = vadd.xlane.f32.xlu0 %v1217
        %v1219 = vpop.xlane.xlu0 %1218
        %v1220 = vrcp.pop %v1216
        %v1221 = vrcp.pop %v1219
        %v1222 = vmul.f32 %v1211, %v1220
        %v1223 = vmul.f32 %v1213, %v1221
        %v1224 = vpack.c.bf16 %v1223, %v1222
        %v1226 = vsel %vm1201, %v1224, 0
        %1228 = vmatprep.subr.bf16.mxu0 0
        %1229 = vmatpush1.bf16.msra.mxu0 %v1136
        %1230 = vmatprep.subr.bf16.mxu0 0
        %1231 = vmatpush1.bf16.msra.mxu0 0
        %1232 = vmatprep.subr.bf16.mxu0 0
        %1233 = vmatpush1.bf16.msra.mxu0 0
        %1234 = vmatprep.subr.bf16.mxu0 0
        %1235 = vmatpush1.bf16.msra.mxu0 0
        %1236 = vmatprep.subr.bf16.mxu0 0
        %1237 = vmatpush1.bf16.msra.mxu0 0
        %1238 = vmatprep.subr.bf16.mxu0 0
        %1239 = vmatpush1.bf16.msra.mxu0 0
        %1240 = vmatprep.subr.bf16.mxu0 0
        %1241 = vmatpush1.bf16.msra.mxu0 0
        %1242 = vmatprep.subr.bf16.mxu0 0
        %1243 = vmatpush1.bf16.msra.mxu0 0
        %1244 = vmatprep.subr.bf16.mxu0 0
        %1245 = vmatpush1.bf16.msra.mxu0 0
        %1246 = vmatprep.subr.bf16.mxu0 0
        %1247 = vmatpush1.bf16.msra.mxu0 0
        %1248 = vmatprep.subr.bf16.mxu0 0
        %1249 = vmatpush1.bf16.msra.mxu0 0
        %1250 = vmatprep.subr.bf16.mxu0 0
        %1251 = vmatpush1.bf16.msra.mxu0 0
        %1252 = vmatprep.subr.bf16.mxu0 0
        %1253 = vmatpush1.bf16.msra.mxu0 0
        %1254 = vmatprep.subr.bf16.mxu0 0
        %1255 = vmatpush1.bf16.msra.mxu0 0
        %1256 = vmatprep.subr.bf16.mxu0 0
        %1257 = vmatpush1.bf16.msra.mxu0 0
        %1258 = vmatprep.subr.bf16.mxu0 0
        %1259 = vmatpush1.bf16.msra.mxu0 0
        %1260 = vmatprep.mubr.bf16.mxu0 0
        %1261 = vmatmul.mubr.bf16.gmra.mrb[0].mxu0 %v1226
        %v1262 = vpop.f32.mrb[0].mxu0
        %v1263 = vadd.f32 0.0, %v1262
        %v1264 = vpop.f32.mrb[0].mxu0
        %v1265 = vpop.f32.mrb[0].mxu0
        %v1266 = vadd.f32 0.0, %v1265
        %v1267 = vpop.f32.mrb[0].mxu0
        %1268 = vdwg.mxu0
        %v1269 = vpack.c.bf16 %v1266, %v1263
        %1271 = vrot.lane.b32.xlu0 %v1134, 96
        %v1272 = vpop.permute.xlu0 %1271
        %1274 = vrot.lane.b32.xlu0 %v1135, 96
        %v1275 = vpop.permute.xlu0 %1274
        %v1277 = vsel %vm1153, %v1272, 0
        %v1280 = vsel %vm1153, %v1275, 0
        %1282 = vmatprep.subr.bf16.mxu0 0
        %1283 = vmatpush1.bf16.xpose.msra.mxu0 %v1280
        %1284 = vmatprep.subr.bf16.mxu0 0
        %1285 = vmatpush1.bf16.xpose.msra.mxu0 0
        %1286 = vmatprep.subr.bf16.mxu0 0
        %1287 = vmatpush1.bf16.xpose.msra.mxu0 0
        %1288 = vmatprep.subr.bf16.mxu0 0
        %1289 = vmatpush1.bf16.xpose.msra.mxu0 0
        %1290 = vmatprep.subr.bf16.mxu0 0
        %1291 = vmatpush1.bf16.xpose.msra.mxu0 0
        %1292 = vmatprep.subr.bf16.mxu0 0
        %1293 = vmatpush1.bf16.xpose.msra.mxu0 0
        %1294 = vmatprep.subr.bf16.mxu0 0
        %1295 = vmatpush1.bf16.xpose.msra.mxu0 0
        %1296 = vmatprep.subr.bf16.mxu0 0
        %1297 = vmatpush1.bf16.xpose.msra.mxu0 0
        %1298 = vmatprep.subr.bf16.mxu0 0
        %1299 = vmatpush1.bf16.xpose.msra.mxu0 0
        %1300 = vmatprep.subr.bf16.mxu0 0
        %1301 = vmatpush1.bf16.xpose.msra.mxu0 0
        %1302 = vmatprep.subr.bf16.mxu0 0
        %1303 = vmatpush1.bf16.xpose.msra.mxu0 0
        %1304 = vmatprep.subr.bf16.mxu0 0
        %1305 = vmatpush1.bf16.xpose.msra.mxu0 0
        %1306 = vmatprep.subr.bf16.mxu0 0
        %1307 = vmatpush1.bf16.xpose.msra.mxu0 0
        %1308 = vmatprep.subr.bf16.mxu0 0
        %1309 = vmatpush1.bf16.xpose.msra.mxu0 0
        %1310 = vmatprep.subr.bf16.mxu0 0
        %1311 = vmatpush1.bf16.xpose.msra.mxu0 0
        %1312 = vmatprep.subr.bf16.mxu0 0
        %1313 = vmatpush1.bf16.xpose.msra.mxu0 0
        %1314 = vmatprep.mubr.bf16.mxu0 0
        %1315 = vmatmul.mubr.bf16.gmra.mrb[0].mxu0 %v1277
        %v1316 = vpop.f32.mrb[0].mxu0
        %v1317 = vadd.f32 %v829, %v1316
        %v1318 = vpop.f32.mrb[0].mxu0
        %v1319 = vpop.f32.mrb[0].mxu0
        %v1320 = vadd.f32 %v830, %v1319
        %v1321 = vpop.f32.mrb[0].mxu0
        %1322 = vdwg.mxu0
        %v1323 = vsel %vm1201, %v1317, -inf
        %1324 = vmax.xlane.f32.xlu0 %v1323
        %v1325 = vpop.xlane.xlu0 %1324
        %v1326 = vsel %vm1201, %v1320, -inf
        %1327 = vmax.xlane.f32.xlu0 %v1326
        %v1328 = vpop.xlane.xlu0 %1327
        %v1329 = vsub.f32 %v1317, %v1325
        %v1330 = vsub.f32 %v1320, %v1328
        %v1331 = vmul.f32 %v1329, 1.442695
        %v1332 = vpow.pop %v1331
        %v1333 = vmul.f32 %v1330, 1.442695
        %v1334 = vpow.pop %v1333
        %v1335 = vsel %vm1201, %v1332, 0.0
        %1336 = vadd.xlane.f32.xlu0 %v1335
        %v1337 = vpop.xlane.xlu0 %1336
        %v1338 = vsel %vm1201, %v1334, 0.0
        %1339 = vadd.xlane.f32.xlu0 %v1338
        %v1340 = vpop.xlane.xlu0 %1339
        %v1341 = vrcp.pop %v1337
        %v1342 = vrcp.pop %v1340
        %v1343 = vmul.f32 %v1332, %v1341
        %v1344 = vmul.f32 %v1334, %v1342
        %v1345 = vpack.c.bf16 %v1344, %v1343
        %1347 = vrot.lane.b32.xlu0 %v1136, 96
        %v1348 = vpop.permute.xlu0 %1347
        %v1351 = vsel %vm1201, %v1345, 0
        %1353 = vmatprep.subr.bf16.mxu0 0
        %1354 = vmatpush1.bf16.msra.mxu0 %v1348
        %1355 = vmatprep.subr.bf16.mxu0 0
        %1356 = vmatpush1.bf16.msra.mxu0 0
        %1357 = vmatprep.subr.bf16.mxu0 0
        %1358 = vmatpush1.bf16.msra.mxu0 0
        %1359 = vmatprep.subr.bf16.mxu0 0
        %1360 = vmatpush1.bf16.msra.mxu0 0
        %1361 = vmatprep.subr.bf16.mxu0 0
        %1362 = vmatpush1.bf16.msra.mxu0 0
        %1363 = vmatprep.subr.bf16.mxu0 0
        %1364 = vmatpush1.bf16.msra.mxu0 0
        %1365 = vmatprep.subr.bf16.mxu0 0
        %1366 = vmatpush1.bf16.msra.mxu0 0
        %1367 = vmatprep.subr.bf16.mxu0 0
        %1368 = vmatpush1.bf16.msra.mxu0 0
        %1369 = vmatprep.subr.bf16.mxu0 0
        %1370 = vmatpush1.bf16.msra.mxu0 0
        %1371 = vmatprep.subr.bf16.mxu0 0
        %1372 = vmatpush1.bf16.msra.mxu0 0
        %1373 = vmatprep.subr.bf16.mxu0 0
        %1374 = vmatpush1.bf16.msra.mxu0 0
        %1375 = vmatprep.subr.bf16.mxu0 0
        %1376 = vmatpush1.bf16.msra.mxu0 0
        %1377 = vmatprep.subr.bf16.mxu0 0
        %1378 = vmatpush1.bf16.msra.mxu0 0
        %1379 = vmatprep.subr.bf16.mxu0 0
        %1380 = vmatpush1.bf16.msra.mxu0 0
        %1381 = vmatprep.subr.bf16.mxu0 0
        %1382 = vmatpush1.bf16.msra.mxu0 0
        %1383 = vmatprep.subr.bf16.mxu0 0
        %1384 = vmatpush1.bf16.msra.mxu0 0
        %1385 = vmatprep.mubr.bf16.mxu0 0
        %1386 = vmatmul.mubr.bf16.gmra.mrb[0].mxu0 %v1351
        %v1387 = vpop.f32.mrb[0].mxu0
        %v1388 = vadd.f32 0.0, %v1387
        %v1389 = vpop.f32.mrb[0].mxu0
        %v1390 = vpop.f32.mrb[0].mxu0
        %v1391 = vadd.f32 0.0, %v1390
        %v1392 = vpop.f32.mrb[0].mxu0
        %1393 = vdwg.mxu0
        %v1394 = vpack.c.bf16 %v1391, %v1388
        %v1399 = vunpack.c.l.b16 %v1141
        %v1400 = vunpack.c.l.b16 %v1142
        %v1401 = vunpack.c.l.b16 %v1143
        %v1402 = vunpack.c.l.b16 %v1144
        %v1403 = vpack.c.b16 %v1400, %v1399
        %v1404 = vpack.c.b16 %v1402, %v1401
        %v1408 = vsel %vm1153, %v1394, 0
        %1410 = vmatprep.subr.bf16.mxu0 0
        %1411 = vmatpush1.bf16.msra.mxu0 %v1403
        %1412 = vmatprep.subr.bf16.mxu0 0
        %1413 = vmatpush1.bf16.msra.mxu0 %v1404
        %1414 = vmatprep.subr.bf16.mxu0 0
        %1415 = vmatpush1.bf16.msra.mxu0 0
        %1416 = vmatprep.subr.bf16.mxu0 0
        %1417 = vmatpush1.bf16.msra.mxu0 0
        %1418 = vmatprep.subr.bf16.mxu0 0
        %1419 = vmatpush1.bf16.msra.mxu0 0
        %1420 = vmatprep.subr.bf16.mxu0 0
        %1421 = vmatpush1.bf16.msra.mxu0 0
        %1422 = vmatprep.subr.bf16.mxu0 0
        %1423 = vmatpush1.bf16.msra.mxu0 0
        %1424 = vmatprep.subr.bf16.mxu0 0
        %1425 = vmatpush1.bf16.msra.mxu0 0
        %1426 = vmatprep.subr.bf16.mxu0 0
        %1427 = vmatpush1.bf16.msra.mxu0 0
        %1428 = vmatprep.subr.bf16.mxu0 0
        %1429 = vmatpush1.bf16.msra.mxu0 0
        %1430 = vmatprep.subr.bf16.mxu0 0
        %1431 = vmatpush1.bf16.msra.mxu0 0
        %1432 = vmatprep.subr.bf16.mxu0 0
        %1433 = vmatpush1.bf16.msra.mxu0 0
        %1434 = vmatprep.subr.bf16.mxu0 0
        %1435 = vmatpush1.bf16.msra.mxu0 0
        %1436 = vmatprep.subr.bf16.mxu0 0
        %1437 = vmatpush1.bf16.msra.mxu0 0
        %1438 = vmatprep.subr.bf16.mxu0 0
        %1439 = vmatpush1.bf16.msra.mxu0 0
        %1440 = vmatprep.subr.bf16.mxu0 0
        %1441 = vmatpush1.bf16.msra.mxu0 0
        %1442 = vmatprep.mubr.bf16.mxu0 0
        %1443 = vmatmul.mubr.bf16.gmra.mrb[0].mxu0 %v1408
        %v1444 = vpop.f32.mrb[0].mxu0
        %v1445 = vadd.f32 0.0, %v1444
        %v1446 = vpop.f32.mrb[0].mxu0
        %v1447 = vpop.f32.mrb[0].mxu0
        %v1448 = vadd.f32 0.0, %v1447
        %v1449 = vpop.f32.mrb[0].mxu0
        %1450 = vdwg.mxu0
        %v1455 = vunpack.c.l.b16 %v1137
        %v1456 = vunpack.c.l.b16 %v1138
        %v1457 = vunpack.c.l.b16 %v1139
        %v1458 = vunpack.c.l.b16 %v1140
        %v1459 = vpack.c.b16 %v1456, %v1455
        %v1460 = vpack.c.b16 %v1458, %v1457
        %v1464 = vsel %vm1153, %v1269, 0
        %1466 = vmatprep.subr.bf16.mxu0 0
        %1467 = vmatpush1.bf16.msra.mxu0 %v1459
        %1468 = vmatprep.subr.bf16.mxu0 0
        %1469 = vmatpush1.bf16.msra.mxu0 %v1460
        %1470 = vmatprep.subr.bf16.mxu0 0
        %1471 = vmatpush1.bf16.msra.mxu0 0
        %1472 = vmatprep.subr.bf16.mxu0 0
        %1473 = vmatpush1.bf16.msra.mxu0 0
        %1474 = vmatprep.subr.bf16.mxu0 0
        %1475 = vmatpush1.bf16.msra.mxu0 0
        %1476 = vmatprep.subr.bf16.mxu0 0
        %1477 = vmatpush1.bf16.msra.mxu0 0
        %1478 = vmatprep.subr.bf16.mxu0 0
        %1479 = vmatpush1.bf16.msra.mxu0 0
        %1480 = vmatprep.subr.bf16.mxu0 0
        %1481 = vmatpush1.bf16.msra.mxu0 0
        %1482 = vmatprep.subr.bf16.mxu0 0
        %1483 = vmatpush1.bf16.msra.mxu0 0
        %1484 = vmatprep.subr.bf16.mxu0 0
        %1485 = vmatpush1.bf16.msra.mxu0 0
        %1486 = vmatprep.subr.bf16.mxu0 0
        %1487 = vmatpush1.bf16.msra.mxu0 0
        %1488 = vmatprep.subr.bf16.mxu0 0
        %1489 = vmatpush1.bf16.msra.mxu0 0
        %1490 = vmatprep.subr.bf16.mxu0 0
        %1491 = vmatpush1.bf16.msra.mxu0 0
        %1492 = vmatprep.subr.bf16.mxu0 0
        %1493 = vmatpush1.bf16.msra.mxu0 0
        %1494 = vmatprep.subr.bf16.mxu0 0
        %1495 = vmatpush1.bf16.msra.mxu0 0
        %1496 = vmatprep.subr.bf16.mxu0 0
        %1497 = vmatpush1.bf16.msra.mxu0 0
        %1498 = vmatprep.mubr.bf16.mxu0 0
        %1499 = vmatmul.mubr.bf16.gmra.mrb[0].mxu0 %v1464
        %v1500 = vpop.f32.mrb[0].mxu0
        %v1501 = vadd.f32 %v1445, %v1500
        %v1502 = vpop.f32.mrb[0].mxu0
        %v1503 = vpop.f32.mrb[0].mxu0
        %v1504 = vadd.f32 %v1448, %v1503
        %v1505 = vpop.f32.mrb[0].mxu0
        %1506 = vdwg.mxu0
        %1507 = vrot.lane.b32.xlu0 %v1134, 64
        %v1508 = vpop.permute.xlu0 %1507
        %1509 = vrot.lane.b32.xlu0 %v1135, 64
        %v1510 = vpop.permute.xlu0 %1509
        %v1512 = vsel %vm1153, %v1508, 0
        %v1515 = vsel %vm1153, %v1510, 0
        %1517 = vmatprep.subr.bf16.mxu0 0
        %1518 = vmatpush1.bf16.xpose.msra.mxu0 %v1515
        %1519 = vmatprep.subr.bf16.mxu0 0
        %1520 = vmatpush1.bf16.xpose.msra.mxu0 0
        %1521 = vmatprep.subr.bf16.mxu0 0
        %1522 = vmatpush1.bf16.xpose.msra.mxu0 0
        %1523 = vmatprep.subr.bf16.mxu0 0
        %1524 = vmatpush1.bf16.xpose.msra.mxu0 0
        %1525 = vmatprep.subr.bf16.mxu0 0
        %1526 = vmatpush1.bf16.xpose.msra.mxu0 0
        %1527 = vmatprep.subr.bf16.mxu0 0
        %1528 = vmatpush1.bf16.xpose.msra.mxu0 0
        %1529 = vmatprep.subr.bf16.mxu0 0
        %1530 = vmatpush1.bf16.xpose.msra.mxu0 0
        %1531 = vmatprep.subr.bf16.mxu0 0
        %1532 = vmatpush1.bf16.xpose.msra.mxu0 0
        %1533 = vmatprep.subr.bf16.mxu0 0
        %1534 = vmatpush1.bf16.xpose.msra.mxu0 0
        %1535 = vmatprep.subr.bf16.mxu0 0
        %1536 = vmatpush1.bf16.xpose.msra.mxu0 0
        %1537 = vmatprep.subr.bf16.mxu0 0
        %1538 = vmatpush1.bf16.xpose.msra.mxu0 0
        %1539 = vmatprep.subr.bf16.mxu0 0
        %1540 = vmatpush1.bf16.xpose.msra.mxu0 0
        %1541 = vmatprep.subr.bf16.mxu0 0
        %1542 = vmatpush1.bf16.xpose.msra.mxu0 0
        %1543 = vmatprep.subr.bf16.mxu0 0
        %1544 = vmatpush1.bf16.xpose.msra.mxu0 0
        %1545 = vmatprep.subr.bf16.mxu0 0
        %1546 = vmatpush1.bf16.xpose.msra.mxu0 0
        %1547 = vmatprep.subr.bf16.mxu0 0
        %1548 = vmatpush1.bf16.xpose.msra.mxu0 0
        %1549 = vmatprep.mubr.bf16.mxu0 0
        %1550 = vmatmul.mubr.bf16.gmra.mrb[0].mxu0 %v1512
        %v1551 = vpop.f32.mrb[0].mxu0
        %v1552 = vadd.f32 %v829, %v1551
        %v1553 = vpop.f32.mrb[0].mxu0
        %v1554 = vpop.f32.mrb[0].mxu0
        %v1555 = vadd.f32 %v830, %v1554
        %v1556 = vpop.f32.mrb[0].mxu0
        %1557 = vdwg.mxu0
        %v1558 = vsel %vm1201, %v1552, -inf
        %1559 = vmax.xlane.f32.xlu0 %v1558
        %v1560 = vpop.xlane.xlu0 %1559
        %v1561 = vsel %vm1201, %v1555, -inf
        %1562 = vmax.xlane.f32.xlu0 %v1561
        %v1563 = vpop.xlane.xlu0 %1562
        %v1564 = vsub.f32 %v1552, %v1560
        %v1565 = vsub.f32 %v1555, %v1563
        %v1566 = vmul.f32 %v1564, 1.442695
        %v1567 = vpow.pop %v1566
        %v1568 = vmul.f32 %v1565, 1.442695
        %v1569 = vpow.pop %v1568
        %v1570 = vsel %vm1201, %v1567, 0.0
        %1571 = vadd.xlane.f32.xlu0 %v1570
        %v1572 = vpop.xlane.xlu0 %1571
        %v1573 = vsel %vm1201, %v1569, 0.0
        %1574 = vadd.xlane.f32.xlu0 %v1573
        %v1575 = vpop.xlane.xlu0 %1574
        %v1576 = vrcp.pop %v1572
        %v1577 = vrcp.pop %v1575
        %v1578 = vmul.f32 %v1567, %v1576
        %v1579 = vmul.f32 %v1569, %v1577
        %v1580 = vpack.c.bf16 %v1579, %v1578
        %1581 = vrot.lane.b32.xlu0 %v1136, 64
        %v1582 = vpop.permute.xlu0 %1581
        %v1585 = vsel %vm1201, %v1580, 0
        %1587 = vmatprep.subr.bf16.mxu0 0
        %1588 = vmatpush1.bf16.msra.mxu0 %v1582
        %1589 = vmatprep.subr.bf16.mxu0 0
        %1590 = vmatpush1.bf16.msra.mxu0 0
        %1591 = vmatprep.subr.bf16.mxu0 0
        %1592 = vmatpush1.bf16.msra.mxu0 0
        %1593 = vmatprep.subr.bf16.mxu0 0
        %1594 = vmatpush1.bf16.msra.mxu0 0
        %1595 = vmatprep.subr.bf16.mxu0 0
        %1596 = vmatpush1.bf16.msra.mxu0 0
        %1597 = vmatprep.subr.bf16.mxu0 0
        %1598 = vmatpush1.bf16.msra.mxu0 0
        %1599 = vmatprep.subr.bf16.mxu0 0
        %1600 = vmatpush1.bf16.msra.mxu0 0
        %1601 = vmatprep.subr.bf16.mxu0 0
        %1602 = vmatpush1.bf16.msra.mxu0 0
        %1603 = vmatprep.subr.bf16.mxu0 0
        %1604 = vmatpush1.bf16.msra.mxu0 0
        %1605 = vmatprep.subr.bf16.mxu0 0
        %1606 = vmatpush1.bf16.msra.mxu0 0
        %1607 = vmatprep.subr.bf16.mxu0 0
        %1608 = vmatpush1.bf16.msra.mxu0 0
        %1609 = vmatprep.subr.bf16.mxu0 0
        %1610 = vmatpush1.bf16.msra.mxu0 0
        %1611 = vmatprep.subr.bf16.mxu0 0
        %1612 = vmatpush1.bf16.msra.mxu0 0
        %1613 = vmatprep.subr.bf16.mxu0 0
        %1614 = vmatpush1.bf16.msra.mxu0 0
        %1615 = vmatprep.subr.bf16.mxu0 0
        %1616 = vmatpush1.bf16.msra.mxu0 0
        %1617 = vmatprep.subr.bf16.mxu0 0
        %1618 = vmatpush1.bf16.msra.mxu0 0
        %1619 = vmatprep.mubr.bf16.mxu0 0
        %1620 = vmatmul.mubr.bf16.gmra.mrb[0].mxu0 %v1585
        %v1621 = vpop.f32.mrb[0].mxu0
        %v1622 = vadd.f32 0.0, %v1621
        %v1623 = vpop.f32.mrb[0].mxu0
        %v1624 = vpop.f32.mrb[0].mxu0
        %v1625 = vadd.f32 0.0, %v1624
        %v1626 = vpop.f32.mrb[0].mxu0
        %1627 = vdwg.mxu0
        %v1628 = vpack.c.bf16 %v1625, %v1622
        %v1633 = vunpack.c.l.b16 %v1145
        %v1634 = vunpack.c.l.b16 %v1146
        %v1635 = vunpack.c.l.b16 %v1147
        %v1636 = vunpack.c.l.b16 %v1148
        %v1637 = vpack.c.b16 %v1634, %v1633
        %v1638 = vpack.c.b16 %v1636, %v1635
        %v1642 = vsel %vm1153, %v1628, 0
        %1644 = vmatprep.subr.bf16.mxu0 0
        %1645 = vmatpush1.bf16.msra.mxu0 %v1637
        %1646 = vmatprep.subr.bf16.mxu0 0
        %1647 = vmatpush1.bf16.msra.mxu0 %v1638
        %1648 = vmatprep.subr.bf16.mxu0 0
        %1649 = vmatpush1.bf16.msra.mxu0 0
        %1650 = vmatprep.subr.bf16.mxu0 0
        %1651 = vmatpush1.bf16.msra.mxu0 0
        %1652 = vmatprep.subr.bf16.mxu0 0
        %1653 = vmatpush1.bf16.msra.mxu0 0
        %1654 = vmatprep.subr.bf16.mxu0 0
        %1655 = vmatpush1.bf16.msra.mxu0 0
        %1656 = vmatprep.subr.bf16.mxu0 0
        %1657 = vmatpush1.bf16.msra.mxu0 0
        %1658 = vmatprep.subr.bf16.mxu0 0
        %1659 = vmatpush1.bf16.msra.mxu0 0
        %1660 = vmatprep.subr.bf16.mxu0 0
        %1661 = vmatpush1.bf16.msra.mxu0 0
        %1662 = vmatprep.subr.bf16.mxu0 0
        %1663 = vmatpush1.bf16.msra.mxu0 0
        %1664 = vmatprep.subr.bf16.mxu0 0
        %1665 = vmatpush1.bf16.msra.mxu0 0
        %1666 = vmatprep.subr.bf16.mxu0 0
        %1667 = vmatpush1.bf16.msra.mxu0 0
        %1668 = vmatprep.subr.bf16.mxu0 0
        %1669 = vmatpush1.bf16.msra.mxu0 0
        %1670 = vmatprep.subr.bf16.mxu0 0
        %1671 = vmatpush1.bf16.msra.mxu0 0
        %1672 = vmatprep.subr.bf16.mxu0 0
        %1673 = vmatpush1.bf16.msra.mxu0 0
        %1674 = vmatprep.subr.bf16.mxu0 0
        %1675 = vmatpush1.bf16.msra.mxu0 0
        %1676 = vmatprep.mubr.bf16.mxu0 0
        %1677 = vmatmul.mubr.bf16.gmra.mrb[0].mxu0 %v1642
        %v1678 = vpop.f32.mrb[0].mxu0
        %v1679 = vadd.f32 0.0, %v1678
        %v1680 = vpop.f32.mrb[0].mxu0
        %v1681 = vpop.f32.mrb[0].mxu0
        %v1682 = vadd.f32 0.0, %v1681
        %v1683 = vpop.f32.mrb[0].mxu0
        %1684 = vdwg.mxu0
        %v1685 = vadd.f32 %v1501, %v1679
        %v1686 = vadd.f32 %v1504, %v1682
        %1687 = vrot.lane.b32.xlu0 %v1134, 32
        %v1688 = vpop.permute.xlu0 %1687
        %1689 = vrot.lane.b32.xlu0 %v1135, 32
        %v1690 = vpop.permute.xlu0 %1689
        %v1692 = vsel %vm1153, %v1688, 0
        %v1695 = vsel %vm1153, %v1690, 0
        %1697 = vmatprep.subr.bf16.mxu0 0
        %1698 = vmatpush1.bf16.xpose.msra.mxu0 %v1695
        %1699 = vmatprep.subr.bf16.mxu0 0
        %1700 = vmatpush1.bf16.xpose.msra.mxu0 0
        %1701 = vmatprep.subr.bf16.mxu0 0
        %1702 = vmatpush1.bf16.xpose.msra.mxu0 0
        %1703 = vmatprep.subr.bf16.mxu0 0
        %1704 = vmatpush1.bf16.xpose.msra.mxu0 0
        %1705 = vmatprep.subr.bf16.mxu0 0
        %1706 = vmatpush1.bf16.xpose.msra.mxu0 0
        %1707 = vmatprep.subr.bf16.mxu0 0
        %1708 = vmatpush1.bf16.xpose.msra.mxu0 0
        %1709 = vmatprep.subr.bf16.mxu0 0
        %1710 = vmatpush1.bf16.xpose.msra.mxu0 0
        %1711 = vmatprep.subr.bf16.mxu0 0
        %1712 = vmatpush1.bf16.xpose.msra.mxu0 0
        %1713 = vmatprep.subr.bf16.mxu0 0
        %1714 = vmatpush1.bf16.xpose.msra.mxu0 0
        %1715 = vmatprep.subr.bf16.mxu0 0
        %1716 = vmatpush1.bf16.xpose.msra.mxu0 0
        %1717 = vmatprep.subr.bf16.mxu0 0
        %1718 = vmatpush1.bf16.xpose.msra.mxu0 0
        %1719 = vmatprep.subr.bf16.mxu0 0
        %1720 = vmatpush1.bf16.xpose.msra.mxu0 0
        %1721 = vmatprep.subr.bf16.mxu0 0
        %1722 = vmatpush1.bf16.xpose.msra.mxu0 0
        %1723 = vmatprep.subr.bf16.mxu0 0
        %1724 = vmatpush1.bf16.xpose.msra.mxu0 0
        %1725 = vmatprep.subr.bf16.mxu0 0
        %1726 = vmatpush1.bf16.xpose.msra.mxu0 0
        %1727 = vmatprep.subr.bf16.mxu0 0
        %1728 = vmatpush1.bf16.xpose.msra.mxu0 0
        %1729 = vmatprep.mubr.bf16.mxu0 0
        %1730 = vmatmul.mubr.bf16.gmra.mrb[0].mxu0 %v1692
        %v1731 = vpop.f32.mrb[0].mxu0
        %v1732 = vadd.f32 %v829, %v1731
        %v1733 = vpop.f32.mrb[0].mxu0
        %v1734 = vpop.f32.mrb[0].mxu0
        %v1735 = vadd.f32 %v830, %v1734
        %v1736 = vpop.f32.mrb[0].mxu0
        %1737 = vdwg.mxu0
        %v1738 = vsel %vm1201, %v1732, -inf
        %1739 = vmax.xlane.f32.xlu0 %v1738
        %v1740 = vpop.xlane.xlu0 %1739
        %v1741 = vsel %vm1201, %v1735, -inf
        %1742 = vmax.xlane.f32.xlu0 %v1741
        %v1743 = vpop.xlane.xlu0 %1742
        %v1744 = vsub.f32 %v1732, %v1740
        %v1745 = vsub.f32 %v1735, %v1743
        %v1746 = vmul.f32 %v1744, 1.442695
        %v1747 = vpow.pop %v1746
        %v1748 = vmul.f32 %v1745, 1.442695
        %v1749 = vpow.pop %v1748
        %v1750 = vsel %vm1201, %v1747, 0.0
        %1751 = vadd.xlane.f32.xlu0 %v1750
        %v1752 = vpop.xlane.xlu0 %1751
        %v1753 = vsel %vm1201, %v1749, 0.0
        %1754 = vadd.xlane.f32.xlu0 %v1753
        %v1755 = vpop.xlane.xlu0 %1754
        %v1756 = vrcp.pop %v1752
        %v1757 = vrcp.pop %v1755
        %v1758 = vmul.f32 %v1747, %v1756
        %v1759 = vmul.f32 %v1749, %v1757
        %v1760 = vpack.c.bf16 %v1759, %v1758
        %1761 = vrot.lane.b32.xlu0 %v1136, 32
        %v1762 = vpop.permute.xlu0 %1761
        %v1765 = vsel %vm1201, %v1760, 0
        %1767 = vmatprep.subr.bf16.mxu0 0
        %1768 = vmatpush1.bf16.msra.mxu0 %v1762
        %1769 = vmatprep.subr.bf16.mxu0 0
        %1770 = vmatpush1.bf16.msra.mxu0 0
        %1771 = vmatprep.subr.bf16.mxu0 0
        %1772 = vmatpush1.bf16.msra.mxu0 0
        %1773 = vmatprep.subr.bf16.mxu0 0
        %1774 = vmatpush1.bf16.msra.mxu0 0
        %1775 = vmatprep.subr.bf16.mxu0 0
        %1776 = vmatpush1.bf16.msra.mxu0 0
        %1777 = vmatprep.subr.bf16.mxu0 0
        %1778 = vmatpush1.bf16.msra.mxu0 0
        %1779 = vmatprep.subr.bf16.mxu0 0
        %1780 = vmatpush1.bf16.msra.mxu0 0
        %1781 = vmatprep.subr.bf16.mxu0 0
        %1782 = vmatpush1.bf16.msra.mxu0 0
        %1783 = vmatprep.subr.bf16.mxu0 0
        %1784 = vmatpush1.bf16.msra.mxu0 0
        %1785 = vmatprep.subr.bf16.mxu0 0
        %1786 = vmatpush1.bf16.msra.mxu0 0
        %1787 = vmatprep.subr.bf16.mxu0 0
        %1788 = vmatpush1.bf16.msra.mxu0 0
        %1789 = vmatprep.subr.bf16.mxu0 0
        %1790 = vmatpush1.bf16.msra.mxu0 0
        %1791 = vmatprep.subr.bf16.mxu0 0
        %1792 = vmatpush1.bf16.msra.mxu0 0
        %1793 = vmatprep.subr.bf16.mxu0 0
        %1794 = vmatpush1.bf16.msra.mxu0 0
        %1795 = vmatprep.subr.bf16.mxu0 0
        %1796 = vmatpush1.bf16.msra.mxu0 0
        %1797 = vmatprep.subr.bf16.mxu0 0
        %1798 = vmatpush1.bf16.msra.mxu0 0
        %1799 = vmatprep.mubr.bf16.mxu0 0
        %1800 = vmatmul.mubr.bf16.gmra.mrb[0].mxu0 %v1765
        %v1801 = vpop.f32.mrb[0].mxu0
        %v1802 = vadd.f32 0.0, %v1801
        %v1803 = vpop.f32.mrb[0].mxu0
        %v1804 = vpop.f32.mrb[0].mxu0
        %v1805 = vadd.f32 0.0, %v1804
        %v1806 = vpop.f32.mrb[0].mxu0
        %1807 = vdwg.mxu0
        %v1808 = vpack.c.bf16 %v1805, %v1802
        %v1813 = vunpack.c.l.b16 %v1149
        %v1814 = vunpack.c.l.b16 %v1150
        %v1815 = vunpack.c.l.b16 %v1151
        %v1816 = vunpack.c.l.b16 %v1152
        %v1817 = vpack.c.b16 %v1814, %v1813
        %v1818 = vpack.c.b16 %v1816, %v1815
        %v1822 = vsel %vm1153, %v1808, 0
        %1824 = vmatprep.subr.bf16.mxu0 0
        %1825 = vmatpush1.bf16.msra.mxu0 %v1817
        %1826 = vmatprep.subr.bf16.mxu0 0
        %1827 = vmatpush1.bf16.msra.mxu0 %v1818
        %1828 = vmatprep.subr.bf16.mxu0 0
        %1829 = vmatpush1.bf16.msra.mxu0 0
        %1830 = vmatprep.subr.bf16.mxu0 0
        %1831 = vmatpush1.bf16.msra.mxu0 0
        %1832 = vmatprep.subr.bf16.mxu0 0
        %1833 = vmatpush1.bf16.msra.mxu0 0
        %1834 = vmatprep.subr.bf16.mxu0 0
        %1835 = vmatpush1.bf16.msra.mxu0 0
        %1836 = vmatprep.subr.bf16.mxu0 0
        %1837 = vmatpush1.bf16.msra.mxu0 0
        %1838 = vmatprep.subr.bf16.mxu0 0
        %1839 = vmatpush1.bf16.msra.mxu0 0
        %1840 = vmatprep.subr.bf16.mxu0 0
        %1841 = vmatpush1.bf16.msra.mxu0 0
        %1842 = vmatprep.subr.bf16.mxu0 0
        %1843 = vmatpush1.bf16.msra.mxu0 0
        %1844 = vmatprep.subr.bf16.mxu0 0
        %1845 = vmatpush1.bf16.msra.mxu0 0
        %1846 = vmatprep.subr.bf16.mxu0 0
        %1847 = vmatpush1.bf16.msra.mxu0 0
        %1848 = vmatprep.subr.bf16.mxu0 0
        %1849 = vmatpush1.bf16.msra.mxu0 0
        %1850 = vmatprep.subr.bf16.mxu0 0
        %1851 = vmatpush1.bf16.msra.mxu0 0
        %1852 = vmatprep.subr.bf16.mxu0 0
        %1853 = vmatpush1.bf16.msra.mxu0 0
        %1854 = vmatprep.subr.bf16.mxu0 0
        %1855 = vmatpush1.bf16.msra.mxu0 0
        %1856 = vmatprep.mubr.bf16.mxu0 0
        %1857 = vmatmul.mubr.bf16.gmra.mrb[0].mxu0 %v1822
        %v1858 = vpop.f32.mrb[0].mxu0
        %v1859 = vadd.f32 0.0, %v1858
        %v1860 = vpop.f32.mrb[0].mxu0
        %v1861 = vpop.f32.mrb[0].mxu0
        %v1862 = vadd.f32 0.0, %v1861
        %v1863 = vpop.f32.mrb[0].mxu0
        %1864 = vdwg.mxu0
        %v1865 = vadd.f32 %v1685, %v1859
        %v1866 = vadd.f32 %v1686, %v1862
        %v1867 = vadd.f32 %v827, %v1865
        %v1868 = vadd.f32 %v828, %v1866
        %v1869 = vld [vmem:[%s804] sm:$0x1]
        %v1871 = vlaneseq
        %v1872 = vshrl.u32 %v1871, 7
        %v1873 = vsub.s32 0, %v1872
        %v1874 = vrot.slane %v1869, %v1873
        %v1876 = vadd.f32 %v1867, %v1874
        %v1877 = vadd.f32 %v1868, %v1874
        %v1878 = vld [vmem:[%s807] sm:$0x1]
        %v1879 = vld [vmem:[%s810] sm:$0x1]
        %1880 = vadd.xlane.f32.xlu0 %v1876
        %v1881 = vpop.xlane.xlu0 %1880
        %1882 = vadd.xlane.f32.xlu0 %v1877
        %v1883 = vpop.xlane.xlu0 %1882
        %v1884 = vmul.f32 %v1881, %v837
        %v1885 = vmul.f32 %v1883, %v837
        %v1886 = vsub.f32 %v1876, %v1884
        %v1887 = vsub.f32 %v1877, %v1885
        %v1888 = vmul.f32 %v1886, %v1886
        %v1889 = vmul.f32 %v1887, %v1887
        %1890 = vadd.xlane.f32.xlu0 %v1888
        %v1891 = vpop.xlane.xlu0 %1890
        %1892 = vadd.xlane.f32.xlu0 %v1889
        %v1893 = vpop.xlane.xlu0 %1892
        %v1894 = vmul.f32 %v1891, %v837
        %v1895 = vmul.f32 %v1893, %v837
        %v1896 = vadd.f32 %v1894, 1e-05
        %v1897 = vadd.f32 %v1895, 1e-05
        %v1898 = vrsqrt.pop %v1896
        %v1899 = vrsqrt.pop %v1897
        %v1900 = vmul.f32 %v1886, %v1898
        %v1901 = vmul.f32 %v1887, %v1899
        %v1903 = vlaneseq
        %v1904 = vshrl.u32 %v1903, 7
        %v1905 = vsub.s32 0, %v1904
        %v1906 = vrot.slane %v1878, %v1905
        %v1908 = vmul.f32 %v1900, %v1906
        %v1909 = vmul.f32 %v1901, %v1906
        %v1911 = vlaneseq
        %v1912 = vshrl.u32 %v1911, 7
        %v1913 = vsub.s32 0, %v1912
        %v1914 = vrot.slane %v1879, %v1913
        %v1916 = vadd.f32 %v1908, %v1914
        %v1917 = vadd.f32 %v1909, %v1914
        %v1918 = vpack.c.bf16 %v1917, %v1916
        %v1919 = vld [vmem:[%s702] sm:$0xff]
        %v1920 = vld [vmem:[%s702 + $0x8] sm:$0xff]
        %v1921 = vld [vmem:[%s702 + $0x10] sm:$0xff]
        %v1922 = vld [vmem:[%s702 + $0x18] sm:$0xff]
        %v1923 = vld [vmem:[%s702 + $0x20] sm:$0xff]
        %v1924 = vld [vmem:[%s702 + $0x28] sm:$0xff]
        %v1925 = vld [vmem:[%s702 + $0x30] sm:$0xff]
        %v1926 = vld [vmem:[%s702 + $0x38] sm:$0xff]
        %v1927 = vld [vmem:[%s702 + $0x40] sm:$0xff]
        %v1928 = vld [vmem:[%s702 + $0x48] sm:$0xff]
        %v1929 = vld [vmem:[%s702 + $0x50] sm:$0xff]
        %v1930 = vld [vmem:[%s702 + $0x58] sm:$0xff]
        %v1931 = vld [vmem:[%s702 + $0x60] sm:$0xff]
        %v1932 = vld [vmem:[%s702 + $0x68] sm:$0xff]
        %v1933 = vld [vmem:[%s702 + $0x70] sm:$0xff]
        %v1934 = vld [vmem:[%s702 + $0x78] sm:$0xff]
        %v1935 = vld [vmem:[%s814] sm:$0x3]
        %v1937 = vlaneseq
        %v1938 = vshrl.u32 %v1937, 7
        %v1939 = vsub.s32 0, %v1938
        %v1940 = vrot.slane %v1935, %v1939
        %v1941 = vlaneseq
        %v1942 = vshrl.u32 %v1941, 7
        %v1943 = vsub.s32 1, %v1942
        %v1944 = vrot.slane %v1935, %v1943
        %v1963 = vunpack.c.l.b16 %v1919
        %v1964 = vunpack.c.h.b16 %v1919
        %v1965 = vunpack.c.l.b16 %v1920
        %v1966 = vunpack.c.h.b16 %v1920
        %v1967 = vunpack.c.l.b16 %v1921
        %v1968 = vunpack.c.h.b16 %v1921
        %v1969 = vunpack.c.l.b16 %v1922
        %v1970 = vunpack.c.h.b16 %v1922
        %v1971 = vunpack.c.l.b16 %v1923
        %v1972 = vunpack.c.h.b16 %v1923
        %v1973 = vunpack.c.l.b16 %v1924
        %v1974 = vunpack.c.h.b16 %v1924
        %v1975 = vunpack.c.l.b16 %v1925
        %v1976 = vunpack.c.h.b16 %v1925
        %v1977 = vunpack.c.l.b16 %v1926
        %v1978 = vunpack.c.h.b16 %v1926
        %v1979 = vunpack.c.l.b16 %v1927
        %v1980 = vunpack.c.h.b16 %v1927
        %v1981 = vunpack.c.l.b16 %v1928
        %v1982 = vunpack.c.h.b16 %v1928
        %v1983 = vunpack.c.l.b16 %v1929
        %v1984 = vunpack.c.h.b16 %v1929
        %v1985 = vunpack.c.l.b16 %v1930
        %v1986 = vunpack.c.h.b16 %v1930
        %v1987 = vunpack.c.l.b16 %v1931
        %v1988 = vunpack.c.h.b16 %v1931
        %v1989 = vunpack.c.l.b16 %v1932
        %v1990 = vunpack.c.h.b16 %v1932
        %v1991 = vunpack.c.l.b16 %v1933
        %v1992 = vunpack.c.h.b16 %v1933
        %v1993 = vunpack.c.l.b16 %v1934
        %v1994 = vunpack.c.h.b16 %v1934
        %v1995 = vpack.c.b16 %v1965, %v1963
        %v1996 = vpack.c.b16 %v1966, %v1964
        %v1997 = vpack.c.b16 %v1969, %v1967
        %v1998 = vpack.c.b16 %v1970, %v1968
        %v1999 = vpack.c.b16 %v1973, %v1971
        %v2000 = vpack.c.b16 %v1974, %v1972
        %v2001 = vpack.c.b16 %v1977, %v1975
        %v2002 = vpack.c.b16 %v1978, %v1976
        %v2003 = vpack.c.b16 %v1981, %v1979
        %v2004 = vpack.c.b16 %v1982, %v1980
        %v2005 = vpack.c.b16 %v1985, %v1983
        %v2006 = vpack.c.b16 %v1986, %v1984
        %v2007 = vpack.c.b16 %v1989, %v1987
        %v2008 = vpack.c.b16 %v1990, %v1988
        %v2009 = vpack.c.b16 %v1993, %v1991
        %v2010 = vpack.c.b16 %v1994, %v1992
        %2027 = vmatprep.subr.bf16.mxu0 %v1996
        %2028 = vmatpush1.bf16.msra.mxu0 %v1995
        %2029 = vmatprep.subr.bf16.mxu0 %v1998
        %2030 = vmatpush1.bf16.msra.mxu0 %v1997
        %2031 = vmatprep.subr.bf16.mxu0 %v2000
        %2032 = vmatpush1.bf16.msra.mxu0 %v1999
        %2033 = vmatprep.subr.bf16.mxu0 %v2002
        %2034 = vmatpush1.bf16.msra.mxu0 %v2001
        %2035 = vmatprep.subr.bf16.mxu0 %v2004
        %2036 = vmatpush1.bf16.msra.mxu0 %v2003
        %2037 = vmatprep.subr.bf16.mxu0 %v2006
        %2038 = vmatpush1.bf16.msra.mxu0 %v2005
        %2039 = vmatprep.subr.bf16.mxu0 %v2008
        %2040 = vmatpush1.bf16.msra.mxu0 %v2007
        %2041 = vmatprep.subr.bf16.mxu0 %v2010
        %2042 = vmatpush1.bf16.msra.mxu0 %v2009
        %2043 = vmatprep.subr.bf16.mxu0 0
        %2044 = vmatpush1.bf16.msra.mxu0 0
        %2045 = vmatprep.subr.bf16.mxu0 0
        %2046 = vmatpush1.bf16.msra.mxu0 0
        %2047 = vmatprep.subr.bf16.mxu0 0
        %2048 = vmatpush1.bf16.msra.mxu0 0
        %2049 = vmatprep.subr.bf16.mxu0 0
        %2050 = vmatpush1.bf16.msra.mxu0 0
        %2051 = vmatprep.subr.bf16.mxu0 0
        %2052 = vmatpush1.bf16.msra.mxu0 0
        %2053 = vmatprep.subr.bf16.mxu0 0
        %2054 = vmatpush1.bf16.msra.mxu0 0
        %2055 = vmatprep.subr.bf16.mxu0 0
        %2056 = vmatpush1.bf16.msra.mxu0 0
        %2057 = vmatprep.subr.bf16.mxu0 0
        %2058 = vmatpush1.bf16.msra.mxu0 0
        %2059 = vmatprep.mubr.bf16.mxu0 0
        %2060 = vmatmul.mubr.bf16.gmra.mrb[0].mxu0 %v1918
        %v2061 = vpop.f32.mrb[0].mxu0
        %v2062 = vadd.f32 %v1940, %v2061
        %v2063 = vpop.f32.mrb[0].mxu0
        %v2064 = vadd.f32 %v1944, %v2063
        %v2065 = vpop.f32.mrb[0].mxu0
        %v2066 = vadd.f32 %v1940, %v2065
        %v2067 = vpop.f32.mrb[0].mxu0
        %v2068 = vadd.f32 %v1944, %v2067
        %2069 = vdwg.mxu0
        %v2070 = vmul.f32 %v2062, 1.702
        %v2071 = vmul.f32 %v2064, 1.702
        %v2072 = vmul.f32 %v2066, 1.702
        %v2073 = vmul.f32 %v2068, 1.702
        %v2074 = vxor.u32 %v2070, 2147483648
        %v2075 = vxor.u32 %v2071, 2147483648
        %v2076 = vxor.u32 %v2072, 2147483648
        %v2077 = vxor.u32 %v2073, 2147483648
        %v2078 = vmul.f32 %v2074, 1.442695
        %v2079 = vpow.pop %v2078
        %v2080 = vmul.f32 %v2075, 1.442695
        %v2081 = vpow.pop %v2080
        %v2082 = vmul.f32 %v2076, 1.442695
        %v2083 = vpow.pop %v2082
        %v2084 = vmul.f32 %v2077, 1.442695
        %v2085 = vpow.pop %v2084
        %v2086 = vadd.f32 %v2079, 1.0
        %v2087 = vadd.f32 %v2081, 1.0
        %v2088 = vadd.f32 %v2083, 1.0
        %v2089 = vadd.f32 %v2085, 1.0
        %v2090 = vrcp.pop %v2086
        %v2091 = vmul.f32 1.0, %v2090
        %v2092 = vrcp.pop %v2087
        %v2093 = vmul.f32 1.0, %v2092
        %v2094 = vrcp.pop %v2088
        %v2095 = vmul.f32 1.0, %v2094
        %v2096 = vrcp.pop %v2089
        %v2097 = vmul.f32 1.0, %v2096
        %v2098 = vmul.f32 %v2062, %v2091
        %v2099 = vmul.f32 %v2064, %v2093
        %v2100 = vmul.f32 %v2066, %v2095
        %v2101 = vmul.f32 %v2068, %v2097
        %v2102 = vpack.c.bf16 %v2100, %v2098
        %v2103 = vpack.c.bf16 %v2101, %v2099
        %v2104 = vld [vmem:[%s711] sm:$0xf]
        %v2105 = vld [vmem:[%s711 + $0x4] sm:$0xf]
        %v2106 = vld [vmem:[%s711 + $0x8] sm:$0xf]
        %v2107 = vld [vmem:[%s711 + $0xc] sm:$0xf]
        %v2108 = vld [vmem:[%s711 + $0x10] sm:$0xf]
        %v2109 = vld [vmem:[%s711 + $0x14] sm:$0xf]
        %v2110 = vld [vmem:[%s711 + $0x18] sm:$0xf]
        %v2111 = vld [vmem:[%s711 + $0x1c] sm:$0xf]
        %v2112 = vld [vmem:[%s711 + $0x20] sm:$0xf]
        %v2113 = vld [vmem:[%s711 + $0x24] sm:$0xf]
        %v2114 = vld [vmem:[%s711 + $0x28] sm:$0xf]
        %v2115 = vld [vmem:[%s711 + $0x2c] sm:$0xf]
        %v2116 = vld [vmem:[%s711 + $0x30] sm:$0xf]
        %v2117 = vld [vmem:[%s711 + $0x34] sm:$0xf]
        %v2118 = vld [vmem:[%s711 + $0x38] sm:$0xf]
        %v2119 = vld [vmem:[%s711 + $0x3c] sm:$0xf]
        %v2120 = vld [vmem:[%s711 + $0x40] sm:$0xf]
        %v2121 = vld [vmem:[%s711 + $0x44] sm:$0xf]
        %v2122 = vld [vmem:[%s711 + $0x48] sm:$0xf]
        %v2123 = vld [vmem:[%s711 + $0x4c] sm:$0xf]
        %v2124 = vld [vmem:[%s711 + $0x50] sm:$0xf]
        %v2125 = vld [vmem:[%s711 + $0x54] sm:$0xf]
        %v2126 = vld [vmem:[%s711 + $0x58] sm:$0xf]
        %v2127 = vld [vmem:[%s711 + $0x5c] sm:$0xf]
        %v2128 = vld [vmem:[%s711 + $0x60] sm:$0xf]
        %v2129 = vld [vmem:[%s711 + $0x64] sm:$0xf]
        %v2130 = vld [vmem:[%s711 + $0x68] sm:$0xf]
        %v2131 = vld [vmem:[%s711 + $0x6c] sm:$0xf]
        %v2132 = vld [vmem:[%s711 + $0x70] sm:$0xf]
        %v2133 = vld [vmem:[%s711 + $0x74] sm:$0xf]
        %v2134 = vld [vmem:[%s711 + $0x78] sm:$0xf]
        %v2135 = vld [vmem:[%s711 + $0x7c] sm:$0xf]
        %v2136 = vld [vmem:[%s817] sm:$0x1]
        %v2138 = vlaneseq
        %v2139 = vshrl.u32 %v2138, 7
        %v2140 = vsub.s32 0, %v2139
        %v2141 = vrot.slane %v2136, %v2140
        %v2175 = vunpack.c.l.b16 %v2104
        %v2176 = vunpack.c.l.b16 %v2105
        %v2177 = vunpack.c.l.b16 %v2106
        %v2178 = vunpack.c.l.b16 %v2107
        %v2179 = vunpack.c.l.b16 %v2108
        %v2180 = vunpack.c.l.b16 %v2109
        %v2181 = vunpack.c.l.b16 %v2110
        %v2182 = vunpack.c.l.b16 %v2111
        %v2183 = vunpack.c.l.b16 %v2112
        %v2184 = vunpack.c.l.b16 %v2113
        %v2185 = vunpack.c.l.b16 %v2114
        %v2186 = vunpack.c.l.b16 %v2115
        %v2187 = vunpack.c.l.b16 %v2116
        %v2188 = vunpack.c.l.b16 %v2117
        %v2189 = vunpack.c.l.b16 %v2118
        %v2190 = vunpack.c.l.b16 %v2119
        %v2191 = vunpack.c.l.b16 %v2120
        %v2192 = vunpack.c.l.b16 %v2121
        %v2193 = vunpack.c.l.b16 %v2122
        %v2194 = vunpack.c.l.b16 %v2123
        %v2195 = vunpack.c.l.b16 %v2124
        %v2196 = vunpack.c.l.b16 %v2125
        %v2197 = vunpack.c.l.b16 %v2126
        %v2198 = vunpack.c.l.b16 %v2127
        %v2199 = vunpack.c.l.b16 %v2128
        %v2200 = vunpack.c.l.b16 %v2129
        %v2201 = vunpack.c.l.b16 %v2130
        %v2202 = vunpack.c.l.b16 %v2131
        %v2203 = vunpack.c.l.b16 %v2132
        %v2204 = vunpack.c.l.b16 %v2133
        %v2205 = vunpack.c.l.b16 %v2134
        %v2206 = vunpack.c.l.b16 %v2135
        %v2207 = vpack.c.b16 %v2176, %v2175
        %v2208 = vpack.c.b16 %v2178, %v2177
        %v2209 = vpack.c.b16 %v2180, %v2179
        %v2210 = vpack.c.b16 %v2182, %v2181
        %v2211 = vpack.c.b16 %v2184, %v2183
        %v2212 = vpack.c.b16 %v2186, %v2185
        %v2213 = vpack.c.b16 %v2188, %v2187
        %v2214 = vpack.c.b16 %v2190, %v2189
        %v2215 = vpack.c.b16 %v2192, %v2191
        %v2216 = vpack.c.b16 %v2194, %v2193
        %v2217 = vpack.c.b16 %v2196, %v2195
        %v2218 = vpack.c.b16 %v2198, %v2197
        %v2219 = vpack.c.b16 %v2200, %v2199
        %v2220 = vpack.c.b16 %v2202, %v2201
        %v2221 = vpack.c.b16 %v2204, %v2203
        %v2222 = vpack.c.b16 %v2206, %v2205
        %2239 = vmatprep.subr.bf16.mxu0 0
        %2240 = vmatpush1.bf16.msra.mxu0 %v2207
        %2241 = vmatprep.subr.bf16.mxu0 0
        %2242 = vmatpush1.bf16.msra.mxu0 %v2208
        %2243 = vmatprep.subr.bf16.mxu0 0
        %2244 = vmatpush1.bf16.msra.mxu0 %v2209
        %2245 = vmatprep.subr.bf16.mxu0 0
        %2246 = vmatpush1.bf16.msra.mxu0 %v2210
        %2247 = vmatprep.subr.bf16.mxu0 0
        %2248 = vmatpush1.bf16.msra.mxu0 %v2211
        %2249 = vmatprep.subr.bf16.mxu0 0
        %2250 = vmatpush1.bf16.msra.mxu0 %v2212
        %2251 = vmatprep.subr.bf16.mxu0 0
        %2252 = vmatpush1.bf16.msra.mxu0 %v2213
        %2253 = vmatprep.subr.bf16.mxu0 0
        %2254 = vmatpush1.bf16.msra.mxu0 %v2214
        %2255 = vmatprep.subr.bf16.mxu0 0
        %2256 = vmatpush1.bf16.msra.mxu0 %v2215
        %2257 = vmatprep.subr.bf16.mxu0 0
        %2258 = vmatpush1.bf16.msra.mxu0 %v2216
        %2259 = vmatprep.subr.bf16.mxu0 0
        %2260 = vmatpush1.bf16.msra.mxu0 %v2217
        %2261 = vmatprep.subr.bf16.mxu0 0
        %2262 = vmatpush1.bf16.msra.mxu0 %v2218
        %2263 = vmatprep.subr.bf16.mxu0 0
        %2264 = vmatpush1.bf16.msra.mxu0 %v2219
        %2265 = vmatprep.subr.bf16.mxu0 0
        %2266 = vmatpush1.bf16.msra.mxu0 %v2220
        %2267 = vmatprep.subr.bf16.mxu0 0
        %2268 = vmatpush1.bf16.msra.mxu0 %v2221
        %2269 = vmatprep.subr.bf16.mxu0 0
        %2270 = vmatpush1.bf16.msra.mxu0 %v2222
        %2271 = vmatprep.mubr.bf16.mxu0 %v2103
        %2272 = vmatmul.mubr.bf16.gmra.mrb[0].mxu0 %v2102
        %v2273 = vpop.f32.mrb[0].mxu0
        %v2274 = vadd.f32 %v2141, %v2273
        %v2275 = vpop.f32.mrb[0].mxu0
        %v2276 = vpop.f32.mrb[0].mxu0
        %v2277 = vadd.f32 %v2141, %v2276
        %v2278 = vpop.f32.mrb[0].mxu0
        %2279 = vdwg.mxu0
        %v2280 = vadd.f32 %v1876, %v2274
        %v2281 = vadd.f32 %v1877, %v2277
        %2282 = vst [vmem:[#allocation2] sm:$0xff] %v2280
        %2283 = vst [vmem:[#allocation2 + $0x8] sm:$0xff] %v2281
        %p2284 = scmp.eq.s32.totalorder %s30, 1
        // Predicated region
        $region121: #{tpu_custom_call.1} parent=83 // pred_check
          %p2285 = pneg %p2284
        $region122: #{tpu_custom_call.1} parent=83 // pred_check_branch
          %2287 = sbr.rel (%p2285) target = $region124
        $region123: #{tpu_custom_call.1} parent=83 // pred_region
          %v2288 = vld [vmem:[%s14] sm:$0x1]
          %v2289 = vld [vmem:[%s15] sm:$0x1]
          %2290 = vadd.xlane.f32.xlu0 %v2280
          %v2291 = vpop.xlane.xlu0 %2290
          %2292 = vadd.xlane.f32.xlu0 %v2281
          %v2293 = vpop.xlane.xlu0 %2292
          %v2294 = vmul.f32 %v2291, %v837
          %v2295 = vmul.f32 %v2293, %v837
          %v2296 = vsub.f32 %v2280, %v2294
          %v2297 = vsub.f32 %v2281, %v2295
          %v2298 = vmul.f32 %v2296, %v2296
          %v2299 = vmul.f32 %v2297, %v2297
          %2300 = vadd.xlane.f32.xlu0 %v2298
          %v2301 = vpop.xlane.xlu0 %2300
          %2302 = vadd.xlane.f32.xlu0 %v2299
          %v2303 = vpop.xlane.xlu0 %2302
          %v2304 = vmul.f32 %v2301, %v837
          %v2305 = vmul.f32 %v2303, %v837
          %v2306 = vadd.f32 %v2304, 1e-05
          %v2307 = vadd.f32 %v2305, 1e-05
          %v2308 = vrsqrt.pop %v2306
          %v2309 = vrsqrt.pop %v2307
          %v2310 = vmul.f32 %v2296, %v2308
          %v2311 = vmul.f32 %v2297, %v2309
          %v2313 = vlaneseq
          %v2314 = vshrl.u32 %v2313, 7
          %v2315 = vsub.s32 0, %v2314
          %v2316 = vrot.slane %v2288, %v2315
          %v2318 = vmul.f32 %v2310, %v2316
          %v2319 = vmul.f32 %v2311, %v2316
          %v2321 = vlaneseq
          %v2322 = vshrl.u32 %v2321, 7
          %v2323 = vsub.s32 0, %v2322
          %v2324 = vrot.slane %v2289, %v2323
          %v2326 = vadd.f32 %v2318, %v2324
          %v2327 = vadd.f32 %v2319, %v2324
          %2328 = vst [vmem:[#allocation14] sm:$0xff] %v2326
          %2329 = vst [vmem:[#allocation14 + $0x8] sm:$0xff] %v2327
        $region124: #{tpu_custom_call.1} parent=83 // pred_fallthru
          _
        // Predicated region
        $region125: #{tpu_custom_call.1} parent=83 // pred_check
          %p2330 = pneg %p439
        $region126: #{tpu_custom_call.1} parent=83 // pred_check_branch
          %2332 = sbr.rel (%p2330) target = $region128
        $region127: #{tpu_custom_call.1} parent=83 // pred_region
          %s2334 = ssub.s32 256, 256
          %2335 = vsyncadd [#allocation5], %s2334
          %s2336 = sshll.u32 [#allocation14], 4
          %s2337 = int_to_ptr.vmem [resolvable:$true] %s2336
          %2342 = dma.vmem_to_hbm [thread:$0]  %s2337, 256, %s16, [#allocation5], 128, 128, 8
        $region128: #{tpu_custom_call.1} parent=83 // pred_fallthru
          _
        // Predicated region
        $region129: #{tpu_custom_call.1} parent=83 // pred_check
          %p2343 = pneg %p439
        $region130: #{tpu_custom_call.1} parent=83 // pred_check_branch
          %2345 = sbr.rel (%p2343) target = $region132
        $region131: #{tpu_custom_call.1} parent=83 // pred_region
          %2346 = dma.done [#allocation5], 256
        $region132: #{tpu_custom_call.1} parent=83 // pred_fallthru
          _
      $region84: #{tpu_custom_call.1} parent=5 // pred_fallthru
        _
      %p2347 = scmp.le.s32.totalorder 2, %s25
      // Predicated region
      $region133: #{tpu_custom_call.1} parent=5 // pred_check
        %p2348 = pneg %p2347
      $region134: #{tpu_custom_call.1} parent=5 // pred_check_branch
        %2350 = sbr.rel (%p2348) target = $region136
      $region135: #{tpu_custom_call.1} parent=5 // pred_region
        %s2351 = ssub.s32 %s25, 2
      $region136: #{tpu_custom_call.1} parent=5 // pred_fallthru
        _
    $region6: #{tpu_custom_call.1} parent=1 // loop_footer
      %s29 = sadd.s32 1, %s25
    $region7: #{tpu_custom_call.1} parent=1 // loop_footer_branch
      %24 = sbr.rel target = $region3
    $region8: #{tpu_custom_call.1} parent=1 // loop_exit
      _
    %2352 = vsyncpa [#allocation4], 1
    %s2353 = scalar_lea.sflag [#allocation4], 1
    %2354 = vsyncpa %s2353, 1
    %2355 = vsyncpa [#allocation7], 1
    %2356 = vsyncpa [#allocation5], 1
    %s2357 = scalar_lea.sflag [#allocation5], 1
    %2358 = vsyncpa %s2357, 1

</llo_original>
